<compile_context>
chip_gen: v7x
topology: tpu7x:2x2x1
jax: 0.10.0
libtpu: 0.0.40
codegen_flags: <defaults>
</compile_context>

<pallas_src>
import functools

import numpy as np
import jax
import jax.numpy as jnp
from jax import lax
from jax.experimental import pallas as pl
from jax.experimental.pallas import tpu as pltpu

EPS = 1e-5
N_LAYERS = 3


# ----------------------------------------------------------------------------
# Fused Pallas kernel: (Conv3x3 + folded BN + PReLU) x 3, one image per step
# ----------------------------------------------------------------------------
def _dec_block_kernel(x_ref, w_ref, scale_ref, shift_ref, alpha_ref, o_ref,
                      *, H, W, C):
    # x_ref:     (1, H, W*C)           lane-dense NHWC activation (W,C flattened)
    # w_ref:     (3, 3, (W+2)*C, W*C)  per-layer, per-ky Toeplitz conv weights
    # scale_ref: (3, 1, W*C)           folded BN scale, tiled across W
    # shift_ref: (3, 1, W*C)           folded BN shift (incl. conv bias), tiled
    # alpha_ref: (3,)                  PReLU slopes (SMEM scalars)
    # o_ref:     (1, H, W*C)
    WC = W * C
    WP2C = (W + 2) * C

    cur = x_ref[0]                                     # (H, W*C), float32
    zcol = jnp.zeros((H, C), jnp.float32)              # horizontal zero pad
    zrow = jnp.zeros((1, WP2C), jnp.float32)           # vertical zero pad

    for l in range(N_LAYERS):                          # statically unrolled
        mid = jnp.concatenate([zcol, cur, zcol], axis=1)     # (H, (W+2)*C)
        plane = jnp.concatenate([zrow, mid, zrow], axis=0)   # (H+2, (W+2)*C)

        acc = jnp.dot(plane[0:H, :], w_ref[l, 0],
                      preferred_element_type=jnp.float32)
        acc = acc + jnp.dot(plane[1:H + 1, :], w_ref[l, 1],
                            preferred_element_type=jnp.float32)
        acc = acc + jnp.dot(plane[2:H + 2, :], w_ref[l, 2],
                            preferred_element_type=jnp.float32)

        y = acc * scale_ref[l] + shift_ref[l]          # folded BN (+ conv bias)
        cur = jnp.where(y > 0.0, y, alpha_ref[l] * y)  # PReLU (shared alpha)

    o_ref[0] = cur


def _dec_block_pallas(x_flat, w_all, scale_all, shift_all, alpha_all, H, W, C):
    N = x_flat.shape[0]
    WC = W * C
    WP2C = (W + 2) * C
    kern = functools.partial(_dec_block_kernel, H=H, W=W, C=C)
    return pl.pallas_call(
        kern,
        out_shape=jax.ShapeDtypeStruct((N, H, WC), jnp.float32),
        grid=(N,),
        in_specs=[
            pl.BlockSpec((1, H, WC), lambda n: (n, 0, 0)),
            pl.BlockSpec((N_LAYERS, 3, WP2C, WC), lambda n: (0, 0, 0, 0)),
            pl.BlockSpec((N_LAYERS, 1, WC), lambda n: (0, 0, 0)),
            pl.BlockSpec((N_LAYERS, 1, WC), lambda n: (0, 0, 0)),
            pl.BlockSpec(memory_space=pltpu.MemorySpace.SMEM),
        ],
        out_specs=pl.BlockSpec((1, H, WC), lambda n: (n, 0, 0)),
        compiler_params=pltpu.CompilerParams(
            dimension_semantics=("parallel",)),
    )(x_flat, w_all, scale_all, shift_all, alpha_all)


# ----------------------------------------------------------------------------
# DecBlock forward (NCHW in / NCHW out, like PyTorch)
# ----------------------------------------------------------------------------
@jax.jit
def dec_block_forward(x_nchw, skip_nchw, w_all, scale_all, shift_all, alpha_all):
    del skip_nchw                       # unused, matching the PyTorch forward
    N, C, H, W = x_nchw.shape
    x_flat = jnp.transpose(x_nchw, (0, 2, 3, 1)).reshape(N, H, W * C)
    x_flat = x_flat.astype(jnp.float32)
    out_flat = _dec_block_pallas(x_flat, w_all, scale_all, shift_all,
                                 alpha_all, H, W, C)
    out_nchw = jnp.transpose(out_flat.reshape(N, H, W, C), (0, 3, 1, 2))
    return jnp.concatenate([out_nchw, x_nchw], axis=1)


# ----------------------------------------------------------------------------
# Parameter construction (deterministic, synthetic) and host-side folding
# ----------------------------------------------------------------------------
def make_layer_params(key, ch):
    kw, kb, kg, kbt, km, kv = jax.random.split(key, 6)
    w_pt = 0.1 * jax.random.normal(kw, (ch, ch, 3, 3), jnp.float32)   # OIHW
    b = 0.1 * jax.random.normal(kb, (ch,), jnp.float32)
    gamma = 1.0 + 0.1 * jax.random.normal(kg, (ch,), jnp.float32)
    beta = 0.1 * jax.random.normal(kbt, (ch,), jnp.float32)
    mean = 0.1 * jax.random.normal(km, (ch,), jnp.float32)
    var = jnp.abs(jax.random.normal(kv, (ch,), jnp.float32)) + 0.5
    alpha = jnp.array([0.25], jnp.float32)                            # PReLU init
    return dict(w_pt=w_pt, b=b, gamma=gamma, beta=beta,
                mean=mean, var=var, alpha=alpha)


def fold_params(params, W):
    """One-time host (numpy) folding: Toeplitz conv weights + BN scale/shift."""
    n_layers = len(params)
    ch = int(params[0]["w_pt"].shape[0])
    WP2C = (W + 2) * ch
    WC = W * ch
    w_all = np.zeros((n_layers, 3, WP2C, WC), np.float32)
    scale_all = np.zeros((n_layers, 1, WC), np.float32)
    shift_all = np.zeros((n_layers, 1, WC), np.float32)
    alpha_all = np.zeros((n_layers,), np.float32)
    for l, p in enumerate(params):
        wk = np.asarray(p["w_pt"]).transpose(2, 3, 1, 0)   # (ky, kx, cin, cout)
        for ky in range(3):
            for kx in range(3):
                for w in range(W):
                    c = w + kx                              # padded-column index
                    w_all[l, ky,
                          c * ch:(c + 1) * ch,
                          w * ch:(w + 1) * ch] = wk[ky, kx]
        scale = np.asarray(p["gamma"]) / np.sqrt(np.asarray(p["var"]) + EPS)
        shift = (np.asarray(p["beta"])
                 + (np.asarray(p["b"]) - np.asarray(p["mean"])) * scale)
        scale_all[l, 0] = np.tile(scale, W)
        shift_all[l, 0] = np.tile(shift, W)
        alpha_all[l] = float(np.asarray(p["alpha"])[0])
    return (jnp.asarray(w_all), jnp.asarray(scale_all),
            jnp.asarray(shift_all), jnp.asarray(alpha_all))


# ----------------------------------------------------------------------------
# Pure-JAX reference (for verification)
# ----------------------------------------------------------------------------
def ref_dec_block(x_nchw, params):
    h = x_nchw
    for p in params:
        y = lax.conv_general_dilated(
            h, p["w_pt"], (1, 1), "SAME",
            dimension_numbers=("NCHW", "OIHW", "NCHW"))
        y = y + p["b"][None, :, None, None]
        y = (y - p["mean"][None, :, None, None]) / jnp.sqrt(
            p["var"][None, :, None, None] + EPS)
        y = y * p["gamma"][None, :, None, None] + p["beta"][None, :, None, None]
        y = jnp.where(y > 0, y, p["alpha"][0] * y)
        h = y
    return jnp.concatenate([h, x_nchw], axis=1)


if __name__ == "__main__":
    N, CH, H, W = 2, 8, 16, 16          # W * CH = 128 -> lane-dense layout
    key = jax.random.PRNGKey(0)
    kx, ks, k1, k2, k3 = jax.random.split(key, 5)

    x = jax.random.normal(kx, (N, CH, H, W), jnp.float32)
    skip = jax.random.normal(ks, (N, CH, H, W), jnp.float32)   # unused by forward

    params = [make_layer_params(k, CH) for k in (k1, k2, k3)]
    w_all, scale_all, shift_all, alpha_all = fold_params(params, W)

    out = dec_block_forward(x, skip, w_all, scale_all, shift_all, alpha_all)
    out = jax.block_until_ready(out)

    assert out.shape == (N, 2 * CH, H, W), out.shape

    ref = ref_dec_block(x, params)
    if not jnp.allclose(out, ref, rtol=2e-3, atol=2e-3):
        err = float(jnp.max(jnp.abs(out - ref)))
        raise AssertionError(f"Pallas DecBlock mismatch vs reference (max|err|={err})")

    print("KERNEL_OK")
</pallas_src>

<mosaic_0001>
module attributes {stable_mosaic.version = 11 : i64} {
  func.func @_dec_block_kernel(%arg0: i32, %arg1: memref<1x16x128xf32, #tpu.memory_space<vmem>>, %arg2: memref<3x3x144x128xf32, #tpu.memory_space<vmem>>, %arg3: memref<3x1x128xf32, #tpu.memory_space<vmem>>, %arg4: memref<3x1x128xf32, #tpu.memory_space<vmem>>, %arg5: memref<3xf32, #tpu.memory_space<smem>>, %arg6: memref<1x16x128xf32, #tpu.memory_space<vmem>>) attributes {dimension_semantics = [#tpu.dimension_semantics<parallel>], iteration_bounds = array<i64: 2>, scalar_prefetch = 0 : i64, scratch_operands = 0 : i64, tpu.core_type = #tpu.core_type<tc>, window_params = [{transform_indices = @transform_0, window_bounds = array<i64: 1, 16, 128>}, {pipeline_mode = #tpu.pipeline_mode<synchronous>, transform_indices = @transform_1, window_bounds = array<i64: 3, 3, 144, 128>}, {pipeline_mode = #tpu.pipeline_mode<synchronous>, transform_indices = @transform_2, window_bounds = array<i64: 3, 1, 128>}, {pipeline_mode = #tpu.pipeline_mode<synchronous>, transform_indices = @transform_3, window_bounds = array<i64: 3, 1, 128>}, {transform_indices = @transform_4, window_bounds = array<i64: 3>}, {transform_indices = @transform_5, window_bounds = array<i64: 1, 16, 128>}]} {
    %c0 = arith.constant 0 : index
    %c0_0 = arith.constant 0 : index
    %c0_1 = arith.constant 0 : index
    %0 = vector.load %arg1[%c0, %c0_0, %c0_1] : memref<1x16x128xf32, #tpu.memory_space<vmem>>, vector<1x16x128xf32>
    %1 = vector.shape_cast %0 : vector<1x16x128xf32> to vector<16x128xf32>
    %cst = arith.constant 0.000000e+00 : f32
    %2 = vector.broadcast %cst : f32 to vector<16x8xf32>
    %cst_2 = arith.constant 0.000000e+00 : f32
    %3 = vector.broadcast %cst_2 : f32 to vector<1x144xf32>
    %4 = tpu.concatenate %2, %1, %2 in 1 : vector<16x8xf32>, vector<16x128xf32>, vector<16x8xf32> -> vector<16x144xf32>
    %5 = tpu.concatenate %3, %4, %3 in 0 : vector<1x144xf32>, vector<16x144xf32>, vector<1x144xf32> -> vector<18x144xf32>
    %6 = vector.extract_strided_slice %5 {offsets = [0, 0], sizes = [16, 144], strides = [1, 1]} : vector<18x144xf32> to vector<16x144xf32>
    %c0_3 = arith.constant 0 : index
    %c0_4 = arith.constant 0 : index
    %c0_5 = arith.constant 0 : index
    %c0_6 = arith.constant 0 : index
    %7 = vector.load %arg2[%c0_3, %c0_4, %c0_5, %c0_6] : memref<3x3x144x128xf32, #tpu.memory_space<vmem>>, vector<1x1x144x128xf32>
    %8 = vector.shape_cast %7 : vector<1x1x144x128xf32> to vector<144x128xf32>
    %cst_7 = arith.constant dense<0.000000e+00> : vector<16x128xf32>
    %9 = tpu.matmul %6, %8, %cst_7 {dimension_numbers = #tpu.dot_dimension_numbers<[1], [0], [0], [1], [0, 0, 1, 1], [], []>} : vector<16x144xf32>, vector<144x128xf32>, vector<16x128xf32> -> vector<16x128xf32>
    %10 = vector.extract_strided_slice %5 {offsets = [1, 0], sizes = [16, 144], strides = [1, 1]} : vector<18x144xf32> to vector<16x144xf32>
    %c0_8 = arith.constant 0 : index
    %c1 = arith.constant 1 : index
    %c0_9 = arith.constant 0 : index
    %c0_10 = arith.constant 0 : index
    %11 = vector.load %arg2[%c0_8, %c1, %c0_9, %c0_10] : memref<3x3x144x128xf32, #tpu.memory_space<vmem>>, vector<1x1x144x128xf32>
    %12 = vector.shape_cast %11 : vector<1x1x144x128xf32> to vector<144x128xf32>
    %cst_11 = arith.constant dense<0.000000e+00> : vector<16x128xf32>
    %13 = tpu.matmul %10, %12, %cst_11 {dimension_numbers = #tpu.dot_dimension_numbers<[1], [0], [0], [1], [0, 0, 1, 1], [], []>} : vector<16x144xf32>, vector<144x128xf32>, vector<16x128xf32> -> vector<16x128xf32>
    %14 = arith.addf %9, %13 : vector<16x128xf32>
    %15 = vector.extract_strided_slice %5 {offsets = [2, 0], sizes = [16, 144], strides = [1, 1]} : vector<18x144xf32> to vector<16x144xf32>
    %c0_12 = arith.constant 0 : index
    %c2 = arith.constant 2 : index
    %c0_13 = arith.constant 0 : index
    %c0_14 = arith.constant 0 : index
    %16 = vector.load %arg2[%c0_12, %c2, %c0_13, %c0_14] : memref<3x3x144x128xf32, #tpu.memory_space<vmem>>, vector<1x1x144x128xf32>
    %17 = vector.shape_cast %16 : vector<1x1x144x128xf32> to vector<144x128xf32>
    %cst_15 = arith.constant dense<0.000000e+00> : vector<16x128xf32>
    %18 = tpu.matmul %15, %17, %cst_15 {dimension_numbers = #tpu.dot_dimension_numbers<[1], [0], [0], [1], [0, 0, 1, 1], [], []>} : vector<16x144xf32>, vector<144x128xf32>, vector<16x128xf32> -> vector<16x128xf32>
    %19 = arith.addf %14, %18 : vector<16x128xf32>
    %c0_16 = arith.constant 0 : index
    %c0_17 = arith.constant 0 : index
    %c0_18 = arith.constant 0 : index
    %20 = vector.load %arg3[%c0_16, %c0_17, %c0_18] : memref<3x1x128xf32, #tpu.memory_space<vmem>>, vector<1x1x128xf32>
    %21 = vector.shape_cast %20 : vector<1x1x128xf32> to vector<1x128xf32>
    %22 = vector.broadcast %21 : vector<1x128xf32> to vector<16x128xf32>
    %23 = arith.mulf %19, %22 : vector<16x128xf32>
    %c0_19 = arith.constant 0 : index
    %c0_20 = arith.constant 0 : index
    %c0_21 = arith.constant 0 : index
    %24 = vector.load %arg4[%c0_19, %c0_20, %c0_21] : memref<3x1x128xf32, #tpu.memory_space<vmem>>, vector<1x1x128xf32>
    %25 = vector.shape_cast %24 : vector<1x1x128xf32> to vector<1x128xf32>
    %26 = vector.broadcast %25 : vector<1x128xf32> to vector<16x128xf32>
    %27 = arith.addf %23, %26 : vector<16x128xf32>
    %cst_22 = arith.constant 0.000000e+00 : f32
    %28 = vector.broadcast %cst_22 : f32 to vector<16x128xf32>
    %29 = arith.cmpf ogt, %27, %28 : vector<16x128xf32>
    %c0_23 = arith.constant 0 : index
    %30 = memref.load %arg5[%c0_23] : memref<3xf32, #tpu.memory_space<smem>>
    %31 = vector.broadcast %30 : f32 to vector<16x128xf32>
    %32 = arith.mulf %31, %27 : vector<16x128xf32>
    %33 = arith.select %29, %27, %32 : vector<16x128xi1>, vector<16x128xf32>
    %34 = tpu.concatenate %2, %33, %2 in 1 : vector<16x8xf32>, vector<16x128xf32>, vector<16x8xf32> -> vector<16x144xf32>
    %35 = tpu.concatenate %3, %34, %3 in 0 : vector<1x144xf32>, vector<16x144xf32>, vector<1x144xf32> -> vector<18x144xf32>
    %36 = vector.extract_strided_slice %35 {offsets = [0, 0], sizes = [16, 144], strides = [1, 1]} : vector<18x144xf32> to vector<16x144xf32>
    %c1_24 = arith.constant 1 : index
    %c0_25 = arith.constant 0 : index
    %c0_26 = arith.constant 0 : index
    %c0_27 = arith.constant 0 : index
    %37 = vector.load %arg2[%c1_24, %c0_25, %c0_26, %c0_27] : memref<3x3x144x128xf32, #tpu.memory_space<vmem>>, vector<1x1x144x128xf32>
    %38 = vector.shape_cast %37 : vector<1x1x144x128xf32> to vector<144x128xf32>
    %cst_28 = arith.constant dense<0.000000e+00> : vector<16x128xf32>
    %39 = tpu.matmul %36, %38, %cst_28 {dimension_numbers = #tpu.dot_dimension_numbers<[1], [0], [0], [1], [0, 0, 1, 1], [], []>} : vector<16x144xf32>, vector<144x128xf32>, vector<16x128xf32> -> vector<16x128xf32>
    %40 = vector.extract_strided_slice %35 {offsets = [1, 0], sizes = [16, 144], strides = [1, 1]} : vector<18x144xf32> to vector<16x144xf32>
    %c1_29 = arith.constant 1 : index
    %c1_30 = arith.constant 1 : index
    %c0_31 = arith.constant 0 : index
    %c0_32 = arith.constant 0 : index
    %41 = vector.load %arg2[%c1_29, %c1_30, %c0_31, %c0_32] : memref<3x3x144x128xf32, #tpu.memory_space<vmem>>, vector<1x1x144x128xf32>
    %42 = vector.shape_cast %41 : vector<1x1x144x128xf32> to vector<144x128xf32>
    %cst_33 = arith.constant dense<0.000000e+00> : vector<16x128xf32>
    %43 = tpu.matmul %40, %42, %cst_33 {dimension_numbers = #tpu.dot_dimension_numbers<[1], [0], [0], [1], [0, 0, 1, 1], [], []>} : vector<16x144xf32>, vector<144x128xf32>, vector<16x128xf32> -> vector<16x128xf32>
    %44 = arith.addf %39, %43 : vector<16x128xf32>
    %45 = vector.extract_strided_slice %35 {offsets = [2, 0], sizes = [16, 144], strides = [1, 1]} : vector<18x144xf32> to vector<16x144xf32>
    %c1_34 = arith.constant 1 : index
    %c2_35 = arith.constant 2 : index
    %c0_36 = arith.constant 0 : index
    %c0_37 = arith.constant 0 : index
    %46 = vector.load %arg2[%c1_34, %c2_35, %c0_36, %c0_37] : memref<3x3x144x128xf32, #tpu.memory_space<vmem>>, vector<1x1x144x128xf32>
    %47 = vector.shape_cast %46 : vector<1x1x144x128xf32> to vector<144x128xf32>
    %cst_38 = arith.constant dense<0.000000e+00> : vector<16x128xf32>
    %48 = tpu.matmul %45, %47, %cst_38 {dimension_numbers = #tpu.dot_dimension_numbers<[1], [0], [0], [1], [0, 0, 1, 1], [], []>} : vector<16x144xf32>, vector<144x128xf32>, vector<16x128xf32> -> vector<16x128xf32>
    %49 = arith.addf %44, %48 : vector<16x128xf32>
    %c1_39 = arith.constant 1 : index
    %c0_40 = arith.constant 0 : index
    %c0_41 = arith.constant 0 : index
    %50 = vector.load %arg3[%c1_39, %c0_40, %c0_41] : memref<3x1x128xf32, #tpu.memory_space<vmem>>, vector<1x1x128xf32>
    %51 = vector.shape_cast %50 : vector<1x1x128xf32> to vector<1x128xf32>
    %52 = vector.broadcast %51 : vector<1x128xf32> to vector<16x128xf32>
    %53 = arith.mulf %49, %52 : vector<16x128xf32>
    %c1_42 = arith.constant 1 : index
    %c0_43 = arith.constant 0 : index
    %c0_44 = arith.constant 0 : index
    %54 = vector.load %arg4[%c1_42, %c0_43, %c0_44] : memref<3x1x128xf32, #tpu.memory_space<vmem>>, vector<1x1x128xf32>
    %55 = vector.shape_cast %54 : vector<1x1x128xf32> to vector<1x128xf32>
    %56 = vector.broadcast %55 : vector<1x128xf32> to vector<16x128xf32>
    %57 = arith.addf %53, %56 : vector<16x128xf32>
    %cst_45 = arith.constant 0.000000e+00 : f32
    %58 = vector.broadcast %cst_45 : f32 to vector<16x128xf32>
    %59 = arith.cmpf ogt, %57, %58 : vector<16x128xf32>
    %c1_46 = arith.constant 1 : index
    %60 = memref.load %arg5[%c1_46] : memref<3xf32, #tpu.memory_space<smem>>
    %61 = vector.broadcast %60 : f32 to vector<16x128xf32>
    %62 = arith.mulf %61, %57 : vector<16x128xf32>
    %63 = arith.select %59, %57, %62 : vector<16x128xi1>, vector<16x128xf32>
    %64 = tpu.concatenate %2, %63, %2 in 1 : vector<16x8xf32>, vector<16x128xf32>, vector<16x8xf32> -> vector<16x144xf32>
    %65 = tpu.concatenate %3, %64, %3 in 0 : vector<1x144xf32>, vector<16x144xf32>, vector<1x144xf32> -> vector<18x144xf32>
    %66 = vector.extract_strided_slice %65 {offsets = [0, 0], sizes = [16, 144], strides = [1, 1]} : vector<18x144xf32> to vector<16x144xf32>
    %c2_47 = arith.constant 2 : index
    %c0_48 = arith.constant 0 : index
    %c0_49 = arith.constant 0 : index
    %c0_50 = arith.constant 0 : index
    %67 = vector.load %arg2[%c2_47, %c0_48, %c0_49, %c0_50] : memref<3x3x144x128xf32, #tpu.memory_space<vmem>>, vector<1x1x144x128xf32>
    %68 = vector.shape_cast %67 : vector<1x1x144x128xf32> to vector<144x128xf32>
    %cst_51 = arith.constant dense<0.000000e+00> : vector<16x128xf32>
    %69 = tpu.matmul %66, %68, %cst_51 {dimension_numbers = #tpu.dot_dimension_numbers<[1], [0], [0], [1], [0, 0, 1, 1], [], []>} : vector<16x144xf32>, vector<144x128xf32>, vector<16x128xf32> -> vector<16x128xf32>
    %70 = vector.extract_strided_slice %65 {offsets = [1, 0], sizes = [16, 144], strides = [1, 1]} : vector<18x144xf32> to vector<16x144xf32>
    %c2_52 = arith.constant 2 : index
    %c1_53 = arith.constant 1 : index
    %c0_54 = arith.constant 0 : index
    %c0_55 = arith.constant 0 : index
    %71 = vector.load %arg2[%c2_52, %c1_53, %c0_54, %c0_55] : memref<3x3x144x128xf32, #tpu.memory_space<vmem>>, vector<1x1x144x128xf32>
    %72 = vector.shape_cast %71 : vector<1x1x144x128xf32> to vector<144x128xf32>
    %cst_56 = arith.constant dense<0.000000e+00> : vector<16x128xf32>
    %73 = tpu.matmul %70, %72, %cst_56 {dimension_numbers = #tpu.dot_dimension_numbers<[1], [0], [0], [1], [0, 0, 1, 1], [], []>} : vector<16x144xf32>, vector<144x128xf32>, vector<16x128xf32> -> vector<16x128xf32>
    %74 = arith.addf %69, %73 : vector<16x128xf32>
    %75 = vector.extract_strided_slice %65 {offsets = [2, 0], sizes = [16, 144], strides = [1, 1]} : vector<18x144xf32> to vector<16x144xf32>
    %c2_57 = arith.constant 2 : index
    %c2_58 = arith.constant 2 : index
    %c0_59 = arith.constant 0 : index
    %c0_60 = arith.constant 0 : index
    %76 = vector.load %arg2[%c2_57, %c2_58, %c0_59, %c0_60] : memref<3x3x144x128xf32, #tpu.memory_space<vmem>>, vector<1x1x144x128xf32>
    %77 = vector.shape_cast %76 : vector<1x1x144x128xf32> to vector<144x128xf32>
    %cst_61 = arith.constant dense<0.000000e+00> : vector<16x128xf32>
    %78 = tpu.matmul %75, %77, %cst_61 {dimension_numbers = #tpu.dot_dimension_numbers<[1], [0], [0], [1], [0, 0, 1, 1], [], []>} : vector<16x144xf32>, vector<144x128xf32>, vector<16x128xf32> -> vector<16x128xf32>
    %79 = arith.addf %74, %78 : vector<16x128xf32>
    %c2_62 = arith.constant 2 : index
    %c0_63 = arith.constant 0 : index
    %c0_64 = arith.constant 0 : index
    %80 = vector.load %arg3[%c2_62, %c0_63, %c0_64] : memref<3x1x128xf32, #tpu.memory_space<vmem>>, vector<1x1x128xf32>
    %81 = vector.shape_cast %80 : vector<1x1x128xf32> to vector<1x128xf32>
    %82 = vector.broadcast %81 : vector<1x128xf32> to vector<16x128xf32>
    %83 = arith.mulf %79, %82 : vector<16x128xf32>
    %c2_65 = arith.constant 2 : index
    %c0_66 = arith.constant 0 : index
    %c0_67 = arith.constant 0 : index
    %84 = vector.load %arg4[%c2_65, %c0_66, %c0_67] : memref<3x1x128xf32, #tpu.memory_space<vmem>>, vector<1x1x128xf32>
    %85 = vector.shape_cast %84 : vector<1x1x128xf32> to vector<1x128xf32>
    %86 = vector.broadcast %85 : vector<1x128xf32> to vector<16x128xf32>
    %87 = arith.addf %83, %86 : vector<16x128xf32>
    %cst_68 = arith.constant 0.000000e+00 : f32
    %88 = vector.broadcast %cst_68 : f32 to vector<16x128xf32>
    %89 = arith.cmpf ogt, %87, %88 : vector<16x128xf32>
    %c2_69 = arith.constant 2 : index
    %90 = memref.load %arg5[%c2_69] : memref<3xf32, #tpu.memory_space<smem>>
    %91 = vector.broadcast %90 : f32 to vector<16x128xf32>
    %92 = arith.mulf %91, %87 : vector<16x128xf32>
    %93 = arith.select %89, %87, %92 : vector<16x128xi1>, vector<16x128xf32>
    %c0_70 = arith.constant 0 : index
    %c0_71 = arith.constant 0 : index
    %c0_72 = arith.constant 0 : index
    %94 = vector.load %arg6[%c0_70, %c0_71, %c0_72] : memref<1x16x128xf32, #tpu.memory_space<vmem>>, vector<1x16x128xf32>
    %95 = vector.shape_cast %94 : vector<1x16x128xf32> to vector<16x128xf32>
    %96 = vector.shape_cast %93 : vector<16x128xf32> to vector<1x16x128xf32>
    tpu.vector_store %arg6[%c0_70, %c0_71, %c0_72], %96 {strides = array<i32>} : memref<1x16x128xf32, #tpu.memory_space<vmem>>, vector<1x16x128xf32>,
    return
  }
  func.func @transform_0(%arg0: i32) -> (i32, i32, i32) {
    %c0_i32 = arith.constant 0 : i32
    %c0_i32_0 = arith.constant 0 : i32
    %c0_i32_1 = arith.constant 0 : i32
    return %arg0, %c0_i32, %c0_i32_0 : i32, i32, i32
  }
  func.func @transform_1(%arg0: i32) -> (i32, i32, i32, i32) {
    %c0_i32 = arith.constant 0 : i32
    %c0_i32_0 = arith.constant 0 : i32
    %c0_i32_1 = arith.constant 0 : i32
    %c0_i32_2 = arith.constant 0 : i32
    %c0_i32_3 = arith.constant 0 : i32
    return %c0_i32, %c0_i32_0, %c0_i32_1, %c0_i32_2 : i32, i32, i32, i32
  }
  func.func @transform_2(%arg0: i32) -> (i32, i32, i32) {
    %c0_i32 = arith.constant 0 : i32
    %c0_i32_0 = arith.constant 0 : i32
    %c0_i32_1 = arith.constant 0 : i32
    %c0_i32_2 = arith.constant 0 : i32
    return %c0_i32, %c0_i32_0, %c0_i32_1 : i32, i32, i32
  }
  func.func @transform_3(%arg0: i32) -> (i32, i32, i32) {
    %c0_i32 = arith.constant 0 : i32
    %c0_i32_0 = arith.constant 0 : i32
    %c0_i32_1 = arith.constant 0 : i32
    %c0_i32_2 = arith.constant 0 : i32
    return %c0_i32, %c0_i32_0, %c0_i32_1 : i32, i32, i32
  }
  func.func @transform_4(%arg0: i32) -> i32 {
    %c0_i32 = arith.constant 0 : i32
    %c0_i32_0 = arith.constant 0 : i32
    return %c0_i32 : i32
  }
  func.func @transform_5(%arg0: i32) -> (i32, i32, i32) {
    %c0_i32 = arith.constant 0 : i32
    %c0_i32_0 = arith.constant 0 : i32
    %c0_i32_1 = arith.constant 0 : i32
    return %arg0, %c0_i32, %c0_i32_0 : i32, i32, i32
  }
}

</mosaic_0001>

<llo_original>
// kernel: dec_block_forward.1
$region0: #{dec_block_forward.1}
  #allocation0 [shape = 'u32[]', space=smem, size = 0x4, offset = 0x4, fixed_abs, tag = 'smem constant byte address 0x4 - core index']
  #allocation1 [shape = 'u32[144,128]{1,0:T(1,128)}', space=vmem, size = 0x12000, scoped, tag = 'internal scratch']
  %s0 = inlined_call_operand.vmem [shape: f32[2,16,128], index: 0, kind: input, shape index: {}]
  %s1 = inlined_call_operand.hbm [shape: f32[3,3,144,128], index: 1, kind: input, shape index: {}]
  %s2 = inlined_call_operand.vmem [shape: f32[3,1,128], index: 2, kind: input, shape index: {}]
  %s3 = inlined_call_operand.vmem [shape: f32[3,1,128], index: 3, kind: input, shape index: {}]
  %s4 = inlined_call_operand.vmem [shape: f32[3], index: 4, kind: input, shape index: {}]
  %s5 = inlined_call_operand.vmem [shape: f32[2,16,128], index: 5, kind: output, shape index: {}]
  %s6 = sld [smem:[#allocation0]]
  $region61: #{dec_block_forward.1} parent=0
    _
  %s8 = ssub.s32 1, %s6
  %s9 = scalar_select 0, %s8, %s6
  $region1: #{dec_block_forward.1} parent=0
    #allocation2 [shape = 'u8[663552]{0}', space=vmem, size = 0xa2000, scoped, tag = 'input window, operand 1, single buffered']
    #allocation3 [shape = 's32[2]{0}', space=sflag, size = 0x8, scoped, tag = 'scoped memory for dec_block_forward.1']
    #allocation4 [shape = 's32[2]{0}', space=sflag, size = 0x8, scoped, tag = 'scoped memory for dec_block_forward.1']
    #allocation5 [shape = 'u8[512]{0}', space=smem, size = 0x200, scoped, tag = 'input window, operand 4, single buffered']
    %10 = vsyncpa [#allocation3], 0
    %11 = vsyncpa [#allocation4], 0
    loop: start=0, step=1, limit=4
    $region2: #{dec_block_forward.1} parent=1 // loop_pre_header
      _
    $region3: #{dec_block_forward.1} parent=1 // loop_header
      %s13 = sphi 0, %s17
      %p14 = scmp.ge.s32.totalorder %s13, 4
      %s23 = sphi 0, %s25
      %s26 = sphi 0, %s23
      %s27 = sphi 0, %s26
      %s43 = sphi 0, %s27
      %s47 = sphi 0, %s47
      %s49 = sphi 0, %s47
      %s50 = sphi 0, %s49
      %s64 = sphi 0, %s50
      %s68 = sphi 0, %s68
      %s70 = sphi 0, %s68
      %s71 = sphi 0, %s70
      %s85 = sphi 0, %s71
      %s89 = sphi 0, %s89
      %s91 = sphi 0, %s89
      %s92 = sphi 0, %s91
      %s106 = sphi 0, %s92
      %s110 = sphi 0, %s110
      %s112 = sphi 0, %s110
      %s113 = sphi 0, %s112
      %s127 = sphi 0, %s113
      %s133 = sphi 0, %s135
      %s136 = sphi 0, %s133
      %s137 = sphi 0, %s136
      %s153 = sphi 0, %s137
    $region4: #{dec_block_forward.1} parent=1 // loop_header_branch
      %16 = sbr.rel (%p14) target = $region8
    $region5: #{dec_block_forward.1} parent=1 // loop_body
      %s18 = ssub.s32 %s13, 1
      %s19 = ssub.s32 %s13, 2
      %s20 = sadd.s32 %s13, 1
      %s21 = ssub.s32 %s13, %s20
      %p22 = scmp.eq.s32.totalorder %s21, 0
      %s24 = sadd.s32 %s23, 1
      %s25 = scalar_select %p22, %s23, %s24
      %p28 = pneg %p22
      %p29 = scmp.eq.s32.totalorder %s13, 1
      %p30 = por %p28, %p29
      %p31 = scmp.ne.s32.totalorder %s23, %s26
      %p32 = scmp.eq.s32.totalorder %s13, 0
      %p33 = por %p31, %p32
      %p34 = scmp.ne.s32.totalorder %s23, %s26
      %p35 = scmp.eq.s32.totalorder %s18, 1
      %p36 = por %p34, %p35
      %p37 = scmp.ne.s32.totalorder %s26, %s27
      %p38 = scmp.eq.s32.totalorder %s18, 0
      %p39 = por %p37, %p38
      %p40 = scmp.ne.s32.totalorder %s26, %s27
      %p41 = scmp.eq.s32.totalorder %s19, 1
      %p42 = por %p40, %p41
      %p44 = scmp.ne.s32.totalorder %s27, %s43
      %p45 = scmp.eq.s32.totalorder %s19, 0
      %p46 = por %p44, %p45
      %s48 = sadd.s32 %s47, 1
      %p51 = scmp.eq.s32.totalorder %s13, 1
      %p52 = scmp.ne.s32.totalorder %s47, %s49
      %p53 = scmp.eq.s32.totalorder %s13, 0
      %p54 = por %p52, %p53
      %p55 = scmp.ne.s32.totalorder %s47, %s49
      %p56 = scmp.eq.s32.totalorder %s18, 1
      %p57 = por %p55, %p56
      %p58 = scmp.ne.s32.totalorder %s49, %s50
      %p59 = scmp.eq.s32.totalorder %s18, 0
      %p60 = por %p58, %p59
      %p61 = scmp.ne.s32.totalorder %s49, %s50
      %p62 = scmp.eq.s32.totalorder %s19, 1
      %p63 = por %p61, %p62
      %p65 = scmp.ne.s32.totalorder %s50, %s64
      %p66 = scmp.eq.s32.totalorder %s19, 0
      %p67 = por %p65, %p66
      %s69 = sadd.s32 %s68, 1
      %p72 = scmp.eq.s32.totalorder %s13, 1
      %p73 = scmp.ne.s32.totalorder %s68, %s70
      %p74 = scmp.eq.s32.totalorder %s13, 0
      %p75 = por %p73, %p74
      %p76 = scmp.ne.s32.totalorder %s68, %s70
      %p77 = scmp.eq.s32.totalorder %s18, 1
      %p78 = por %p76, %p77
      %p79 = scmp.ne.s32.totalorder %s70, %s71
      %p80 = scmp.eq.s32.totalorder %s18, 0
      %p81 = por %p79, %p80
      %p82 = scmp.ne.s32.totalorder %s70, %s71
      %p83 = scmp.eq.s32.totalorder %s19, 1
      %p84 = por %p82, %p83
      %p86 = scmp.ne.s32.totalorder %s71, %s85
      %p87 = scmp.eq.s32.totalorder %s19, 0
      %p88 = por %p86, %p87
      %s90 = sadd.s32 %s89, 1
      %p93 = scmp.eq.s32.totalorder %s13, 1
      %p94 = scmp.ne.s32.totalorder %s89, %s91
      %p95 = scmp.eq.s32.totalorder %s13, 0
      %p96 = por %p94, %p95
      %p97 = scmp.ne.s32.totalorder %s89, %s91
      %p98 = scmp.eq.s32.totalorder %s18, 1
      %p99 = por %p97, %p98
      %p100 = scmp.ne.s32.totalorder %s91, %s92
      %p101 = scmp.eq.s32.totalorder %s18, 0
      %p102 = por %p100, %p101
      %p103 = scmp.ne.s32.totalorder %s91, %s92
      %p104 = scmp.eq.s32.totalorder %s19, 1
      %p105 = por %p103, %p104
      %p107 = scmp.ne.s32.totalorder %s92, %s106
      %p108 = scmp.eq.s32.totalorder %s19, 0
      %p109 = por %p107, %p108
      %s111 = sadd.s32 %s110, 1
      %p114 = scmp.eq.s32.totalorder %s13, 1
      %p115 = scmp.ne.s32.totalorder %s110, %s112
      %p116 = scmp.eq.s32.totalorder %s13, 0
      %p117 = por %p115, %p116
      %p118 = scmp.ne.s32.totalorder %s110, %s112
      %p119 = scmp.eq.s32.totalorder %s18, 1
      %p120 = por %p118, %p119
      %p121 = scmp.ne.s32.totalorder %s112, %s113
      %p122 = scmp.eq.s32.totalorder %s18, 0
      %p123 = por %p121, %p122
      %p124 = scmp.ne.s32.totalorder %s112, %s113
      %p125 = scmp.eq.s32.totalorder %s19, 1
      %p126 = por %p124, %p125
      %p128 = scmp.ne.s32.totalorder %s113, %s127
      %p129 = scmp.eq.s32.totalorder %s19, 0
      %p130 = por %p128, %p129
      %s131 = ssub.s32 %s13, %s20
      %p132 = scmp.eq.s32.totalorder %s131, 0
      %s134 = sadd.s32 %s133, 1
      %s135 = scalar_select %p132, %s133, %s134
      %p138 = pneg %p132
      %p139 = scmp.eq.s32.totalorder %s13, 1
      %p140 = por %p138, %p139
      %p141 = scmp.ne.s32.totalorder %s133, %s136
      %p142 = scmp.eq.s32.totalorder %s13, 0
      %p143 = por %p141, %p142
      %p144 = scmp.ne.s32.totalorder %s133, %s136
      %p145 = scmp.eq.s32.totalorder %s18, 1
      %p146 = por %p144, %p145
      %p147 = scmp.ne.s32.totalorder %s136, %s137
      %p148 = scmp.eq.s32.totalorder %s18, 0
      %p149 = por %p147, %p148
      %p150 = scmp.ne.s32.totalorder %s136, %s137
      %p151 = scmp.eq.s32.totalorder %s19, 1
      %p152 = por %p150, %p151
      %p154 = scmp.ne.s32.totalorder %s137, %s153
      %p155 = scmp.eq.s32.totalorder %s19, 0
      %p156 = por %p154, %p155
      %p157 = scmp.le.s32.totalorder 1, %s13
      %p158 = scmp.lt.s32.totalorder %s13, 3
      %p159 = pnand %p157, %p158
      %p160 = pneg %p159
      // Predicated region
      $region9: #{dec_block_forward.1} parent=5 // pred_check
        _
      $region10: #{dec_block_forward.1} parent=5 // pred_check_branch
        %162 = sbr.rel (%p159) target = $region12
      $region11: #{dec_block_forward.1} parent=5 // pred_region
        %s163 = ssub.s32 %s13, 1
        // Predicated region
        $region13: #{dec_block_forward.1} parent=11 // pred_check
          %p164 = pneg %p60
        $region14: #{dec_block_forward.1} parent=11 // pred_check_branch
          %166 = sbr.rel (%p164) target = $region16
        $region15: #{dec_block_forward.1} parent=11 // pred_region
          %s168 = ssub.s32 20736, 20736
          %169 = vsyncadd [#allocation3], %s168
          %s170 = sshll.u32 [#allocation2], 4
          %s171 = int_to_ptr.vmem [resolvable:$true] %s170
          %176 = dma.hbm_to_vmem [thread:$0]  %s1, 20736, %s171, [#allocation3], 128, 128, 8
        $region16: #{dec_block_forward.1} parent=11 // pred_fallthru
          _
        // Predicated region
        $region17: #{dec_block_forward.1} parent=11 // pred_check
          %p177 = pneg %p81
        $region18: #{dec_block_forward.1} parent=11 // pred_check_branch
          %179 = sbr.rel (%p177) target = $region20
        $region19: #{dec_block_forward.1} parent=11 // pred_region
          _
        $region20: #{dec_block_forward.1} parent=11 // pred_fallthru
          _
        // Predicated region
        $region21: #{dec_block_forward.1} parent=11 // pred_check
          %p180 = pneg %p102
        $region22: #{dec_block_forward.1} parent=11 // pred_check_branch
          %182 = sbr.rel (%p180) target = $region24
        $region23: #{dec_block_forward.1} parent=11 // pred_region
          _
        $region24: #{dec_block_forward.1} parent=11 // pred_fallthru
          _
        // Predicated region
        $region25: #{dec_block_forward.1} parent=11 // pred_check
          %p183 = pneg %p123
        $region26: #{dec_block_forward.1} parent=11 // pred_check_branch
          %185 = sbr.rel (%p183) target = $region28
        $region27: #{dec_block_forward.1} parent=11 // pred_region
          %s187 = ssub.s32 16, 16
          %188 = vsyncadd [#allocation4], %s187
          %s190 = sshll.u32 %s4, 4
          %s191 = int_to_ptr.vmem [resolvable:$true] %s190
          %193 = dma.vmem_to_smem %s191, 16, [#allocation5], [#allocation4]
        $region28: #{dec_block_forward.1} parent=11 // pred_fallthru
          _
      $region12: #{dec_block_forward.1} parent=5 // pred_fallthru
        _
      %p194 = scmp.lt.s32.totalorder %s13, 2
      // Predicated region
      $region29: #{dec_block_forward.1} parent=5 // pred_check
        %p195 = pneg %p194
      $region30: #{dec_block_forward.1} parent=5 // pred_check_branch
        %197 = sbr.rel (%p195) target = $region32
      $region31: #{dec_block_forward.1} parent=5 // pred_region
        // Predicated region
        $region33: #{dec_block_forward.1} parent=31 // pred_check
          %p198 = pneg %p33
        $region34: #{dec_block_forward.1} parent=31 // pred_check_branch
          %200 = sbr.rel (%p198) target = $region36
        $region35: #{dec_block_forward.1} parent=31 // pred_region
          %p201 = scmp.lt.s32.totalorder %s13, 1
          %s202 = scalar_select %p201, %s13, 1
          %s203 = smul.addr %s202, 2
          %s204 = smul.addr %s203, 8
          %s205 = scalar_lea.vmem %s0, %s204
        $region36: #{dec_block_forward.1} parent=31 // pred_fallthru
          _
      $region32: #{dec_block_forward.1} parent=5 // pred_fallthru
        _
      %p206 = scmp.le.s32.totalorder 1, %s13
      %p207 = scmp.lt.s32.totalorder %s13, 3
      %p208 = pnand %p206, %p207
      %p209 = pneg %p208
      // Predicated region
      $region37: #{dec_block_forward.1} parent=5 // pred_check
        _
      $region38: #{dec_block_forward.1} parent=5 // pred_check_branch
        %211 = sbr.rel (%p208) target = $region40
      $region39: #{dec_block_forward.1} parent=5 // pred_region
        %s212 = ssub.s32 %s13, 1
        // Predicated region
        $region41: #{dec_block_forward.1} parent=39 // pred_check
          %p213 = pneg %p60
        $region42: #{dec_block_forward.1} parent=39 // pred_check_branch
          %215 = sbr.rel (%p213) target = $region44
        $region43: #{dec_block_forward.1} parent=39 // pred_region
          %216 = dma.done [#allocation3], 20736
        $region44: #{dec_block_forward.1} parent=39 // pred_fallthru
          _
        // Predicated region
        $region45: #{dec_block_forward.1} parent=39 // pred_check
          %p217 = pneg %p123
        $region46: #{dec_block_forward.1} parent=39 // pred_check_branch
          %219 = sbr.rel (%p217) target = $region48
        $region47: #{dec_block_forward.1} parent=39 // pred_region
          %220 = dma.done [#allocation4], 16
        $region48: #{dec_block_forward.1} parent=39 // pred_fallthru
          _
        %221 = sfence
        %p222 = scmp.lt.s32.totalorder %s18, 1
        %s223 = scalar_select %p222, %s18, 1
        %s224 = smul.addr %s223, 2
        %s225 = smul.addr %s224, 8
        %s226 = scalar_lea.vmem %s0, %s225
        %p227 = pneg %p39
        %p228 = pneg %p36
        %p229 = pneg %p60
        %p230 = pneg %p57
        %p231 = pneg %p81
        %p232 = pneg %p78
        %p233 = pneg %p102
        %p234 = pneg %p99
        %p235 = pneg %p123
        %p236 = pneg %p120
        %p237 = pneg %p149
        %p238 = pneg %p146
        %p239 = scmp.lt.s32.totalorder %s18, 1
        %s240 = scalar_select %p239, %s18, 1
        %s241 = smul.addr %s240, 2
        %s242 = smul.addr %s241, 8
        %s243 = scalar_lea.vmem %s5, %s242
        %p244 = scmp.lt.s32.totalorder %s18, 1
        %s245 = scalar_select %p244, %s18, 1
        %s246 = smul.addr %s245, 2
        %s247 = smul.addr %s246, 8
        %s248 = scalar_lea.vmem %s0, %s247
        %p249 = scmp.lt.s32.totalorder %s18, 1
        %s250 = scalar_select %p249, %s18, 1
        %s251 = smul.addr %s250, 2
        %s252 = smul.addr %s251, 8
        %s253 = scalar_lea.vmem %s5, %s252
        %v254 = vld [vmem:[%s248] sm:$0xff]
        %v255 = vld [vmem:[%s248 + $0x8] sm:$0xff]
        %258 = vrot.lane.b32.xlu0 %v254, 8
        %v259 = vpop.permute.xlu0 %258
        %260 = vrot.lane.b32.xlu0 %v255, 8
        %v261 = vpop.permute.xlu0 %260
        %vm264 = vcmask 64512
        %v265 = vsel %vm264, 0.0, %v259
        %v266 = vsel %vm264, 0.0, %v261
        %v267 = vsel %vm264, %v259, 0.0
        %v268 = vsel %vm264, %v261, 0.0
        %vm273 = vcmask 1040384
        %v274 = vrot.slane %v265, 7
        %v275 = vrot.slane %v267, 7
        %v276 = vrot.slane %v266, 7
        %v277 = vsel %vm273, %v274, %v276
        %v278 = vrot.slane %v268, 7
        %v279 = vsel %vm273, %v275, %v278
        %v285 = vsel %vm273, 0.0, %v274
        %v286 = vsel %vm273, 0.0, %v275
        %v287 = vsel %vm273, %v276, 0.0
        %v288 = vsel %vm273, %v278, 0.0
        %v289 = vld [vmem:[#allocation2] sm:$0xff]
        %v290 = vld [vmem:[#allocation2 + $0x8] sm:$0xff]
        %v291 = vld [vmem:[#allocation2 + $0x10] sm:$0xff]
        %v292 = vld [vmem:[#allocation2 + $0x18] sm:$0xff]
        %v293 = vld [vmem:[#allocation2 + $0x20] sm:$0xff]
        %v294 = vld [vmem:[#allocation2 + $0x28] sm:$0xff]
        %v295 = vld [vmem:[#allocation2 + $0x30] sm:$0xff]
        %v296 = vld [vmem:[#allocation2 + $0x38] sm:$0xff]
        %v297 = vld [vmem:[#allocation2 + $0x40] sm:$0xff]
        %v298 = vld [vmem:[#allocation2 + $0x48] sm:$0xff]
        %v299 = vld [vmem:[#allocation2 + $0x50] sm:$0xff]
        %v300 = vld [vmem:[#allocation2 + $0x58] sm:$0xff]
        %v301 = vld [vmem:[#allocation2 + $0x60] sm:$0xff]
        %v302 = vld [vmem:[#allocation2 + $0x68] sm:$0xff]
        %v303 = vld [vmem:[#allocation2 + $0x70] sm:$0xff]
        %v304 = vld [vmem:[#allocation2 + $0x78] sm:$0xff]
        %v305 = vld [vmem:[#allocation2 + $0x80] sm:$0xff]
        %v306 = vld [vmem:[#allocation2 + $0x88] sm:$0xff]
        %s307 = scalar_lea.vmem [#allocation2], 144
        %v308 = vld [vmem:[%s307] sm:$0xff]
        %v309 = vld [vmem:[%s307 + $0x8] sm:$0xff]
        %v310 = vld [vmem:[%s307 + $0x10] sm:$0xff]
        %v311 = vld [vmem:[%s307 + $0x18] sm:$0xff]
        %v312 = vld [vmem:[%s307 + $0x20] sm:$0xff]
        %v313 = vld [vmem:[%s307 + $0x28] sm:$0xff]
        %v314 = vld [vmem:[%s307 + $0x30] sm:$0xff]
        %v315 = vld [vmem:[%s307 + $0x38] sm:$0xff]
        %v316 = vld [vmem:[%s307 + $0x40] sm:$0xff]
        %v317 = vld [vmem:[%s307 + $0x48] sm:$0xff]
        %v318 = vld [vmem:[%s307 + $0x50] sm:$0xff]
        %v319 = vld [vmem:[%s307 + $0x58] sm:$0xff]
        %v320 = vld [vmem:[%s307 + $0x60] sm:$0xff]
        %v321 = vld [vmem:[%s307 + $0x68] sm:$0xff]
        %v322 = vld [vmem:[%s307 + $0x70] sm:$0xff]
        %v323 = vld [vmem:[%s307 + $0x78] sm:$0xff]
        %v324 = vld [vmem:[%s307 + $0x80] sm:$0xff]
        %v325 = vld [vmem:[%s307 + $0x88] sm:$0xff]
        %vm330 = vcmask 1046528
        %v331 = vrot.slane %v285, 1
        %v332 = vrot.slane %v277, 1
        %v333 = vsel %vm330, %v331, %v332
        %v334 = vrot.slane %v286, 1
        %v335 = vrot.slane %v279, 1
        %v336 = vsel %vm330, %v334, %v335
        %v337 = vrot.slane %v287, 1
        %v338 = vsel %vm330, %v332, %v337
        %v339 = vrot.slane %v288, 1
        %v340 = vsel %vm330, %v335, %v339
        %vm343 = vcmask 130048
        %v344 = vsel %vm343, %v336, 0
        %v346 = vsel %vm343, %v340, 0
        %348 = vmatprep.subr.mxu0 0.0
        %349 = vmatpush1.msra.mxu0 %v308
        %350 = vmatprep.subr.mxu0 0.0
        %351 = vmatpush1.msra.mxu0 %v309
        %352 = vmatprep.subr.mxu0 0.0
        %353 = vmatpush1.msra.mxu0 %v310
        %354 = vmatprep.subr.mxu0 0.0
        %355 = vmatpush1.msra.mxu0 %v311
        %356 = vmatprep.subr.mxu0 0.0
        %357 = vmatpush1.msra.mxu0 %v312
        %358 = vmatprep.subr.mxu0 0.0
        %359 = vmatpush1.msra.mxu0 %v313
        %360 = vmatprep.subr.mxu0 0.0
        %361 = vmatpush1.msra.mxu0 %v314
        %362 = vmatprep.subr.mxu0 0.0
        %363 = vmatpush1.msra.mxu0 %v315
        %364 = vmatprep.subr.mxu0 0.0
        %365 = vmatpush1.msra.mxu0 %v316
        %366 = vmatprep.subr.mxu0 0.0
        %367 = vmatpush1.msra.mxu0 %v317
        %368 = vmatprep.subr.mxu0 0.0
        %369 = vmatpush1.msra.mxu0 %v318
        %370 = vmatprep.subr.mxu0 0.0
        %371 = vmatpush1.msra.mxu0 %v319
        %372 = vmatprep.subr.mxu0 0.0
        %373 = vmatpush1.msra.mxu0 %v320
        %374 = vmatprep.subr.mxu0 0.0
        %375 = vmatpush1.msra.mxu0 %v321
        %376 = vmatprep.subr.mxu0 0.0
        %377 = vmatpush1.msra.mxu0 %v322
        %378 = vmatprep.subr.mxu0 0.0
        %379 = vmatpush1.msra.mxu0 %v323
        %380 = vmatprep.subr.mxu0 0.0
        %381 = vmatpush1.msra.mxu0 %v324
        %382 = vmatprep.subr.mxu0 0.0
        %383 = vmatpush1.msra.mxu0 %v325
        %384 = vmatprep.subr.mxu0 0.0
        %385 = vmatpush1.msra.mxu0 0.0
        %386 = vmatprep.subr.mxu0 0.0
        %387 = vmatpush1.msra.mxu0 0.0
        %388 = vmatprep.subr.mxu0 0.0
        %389 = vmatpush1.msra.mxu0 0.0
        %390 = vmatprep.subr.mxu0 0.0
        %391 = vmatpush1.msra.mxu0 0.0
        %392 = vmatprep.subr.mxu0 0.0
        %393 = vmatpush1.msra.mxu0 0.0
        %394 = vmatprep.subr.mxu0 0.0
        %395 = vmatpush1.msra.mxu0 0.0
        %396 = vmatprep.subr.mxu0 0.0
        %397 = vmatpush1.msra.mxu0 0.0
        %398 = vmatprep.subr.mxu0 0.0
        %399 = vmatpush1.msra.mxu0 0.0
        %400 = vmatprep.subr.mxu0 0.0
        %401 = vmatpush1.msra.mxu0 0.0
        %402 = vmatprep.subr.mxu0 0.0
        %403 = vmatpush1.msra.mxu0 0.0
        %404 = vmatprep.subr.mxu0 0.0
        %405 = vmatpush1.msra.mxu0 0.0
        %406 = vmatprep.subr.mxu0 0.0
        %407 = vmatpush1.msra.mxu0 0.0
        %408 = vmatprep.subr.mxu0 0.0
        %409 = vmatpush1.msra.mxu0 0.0
        %410 = vmatprep.subr.mxu0 0.0
        %411 = vmatpush1.msra.mxu0 0.0
        %412 = vmatprep.mubr.f32.mxu0 %v344
        %413 = vmatmul.mubr.f32.gmra.mrb[0].mxu0 %v333
        %v414 = vpop.f32.mrb[0].mxu0
        %v415 = vadd.f32 0.0, %v414
        %v416 = vpop.f32.mrb[0].mxu0
        %417 = vmatprep.mubr.f32.mxu0 %v346
        %418 = vmatmul.mubr.f32.gmra.mrb[0].mxu0 %v338
        %v419 = vpop.f32.mrb[0].mxu0
        %v420 = vadd.f32 0.0, %v419
        %v421 = vpop.f32.mrb[0].mxu0
        %422 = vdwg.mxu0
        %v423 = vsel %vm343, %v286, 0
        %v425 = vsel %vm343, %v279, 0
        %427 = vmatprep.subr.mxu0 0.0
        %428 = vmatpush1.msra.mxu0 %v289
        %429 = vmatprep.subr.mxu0 0.0
        %430 = vmatpush1.msra.mxu0 %v290
        %431 = vmatprep.subr.mxu0 0.0
        %432 = vmatpush1.msra.mxu0 %v291
        %433 = vmatprep.subr.mxu0 0.0
        %434 = vmatpush1.msra.mxu0 %v292
        %435 = vmatprep.subr.mxu0 0.0
        %436 = vmatpush1.msra.mxu0 %v293
        %437 = vmatprep.subr.mxu0 0.0
        %438 = vmatpush1.msra.mxu0 %v294
        %439 = vmatprep.subr.mxu0 0.0
        %440 = vmatpush1.msra.mxu0 %v295
        %441 = vmatprep.subr.mxu0 0.0
        %442 = vmatpush1.msra.mxu0 %v296
        %443 = vmatprep.subr.mxu0 0.0
        %444 = vmatpush1.msra.mxu0 %v297
        %445 = vmatprep.subr.mxu0 0.0
        %446 = vmatpush1.msra.mxu0 %v298
        %447 = vmatprep.subr.mxu0 0.0
        %448 = vmatpush1.msra.mxu0 %v299
        %449 = vmatprep.subr.mxu0 0.0
        %450 = vmatpush1.msra.mxu0 %v300
        %451 = vmatprep.subr.mxu0 0.0
        %452 = vmatpush1.msra.mxu0 %v301
        %453 = vmatprep.subr.mxu0 0.0
        %454 = vmatpush1.msra.mxu0 %v302
        %455 = vmatprep.subr.mxu0 0.0
        %456 = vmatpush1.msra.mxu0 %v303
        %457 = vmatprep.subr.mxu0 0.0
        %458 = vmatpush1.msra.mxu0 %v304
        %459 = vmatprep.subr.mxu0 0.0
        %460 = vmatpush1.msra.mxu0 %v305
        %461 = vmatprep.subr.mxu0 0.0
        %462 = vmatpush1.msra.mxu0 %v306
        %463 = vmatprep.subr.mxu0 0.0
        %464 = vmatpush1.msra.mxu0 0.0
        %465 = vmatprep.subr.mxu0 0.0
        %466 = vmatpush1.msra.mxu0 0.0
        %467 = vmatprep.subr.mxu0 0.0
        %468 = vmatpush1.msra.mxu0 0.0
        %469 = vmatprep.subr.mxu0 0.0
        %470 = vmatpush1.msra.mxu0 0.0
        %471 = vmatprep.subr.mxu0 0.0
        %472 = vmatpush1.msra.mxu0 0.0
        %473 = vmatprep.subr.mxu0 0.0
        %474 = vmatpush1.msra.mxu0 0.0
        %475 = vmatprep.subr.mxu0 0.0
        %476 = vmatpush1.msra.mxu0 0.0
        %477 = vmatprep.subr.mxu0 0.0
        %478 = vmatpush1.msra.mxu0 0.0
        %479 = vmatprep.subr.mxu0 0.0
        %480 = vmatpush1.msra.mxu0 0.0
        %481 = vmatprep.subr.mxu0 0.0
        %482 = vmatpush1.msra.mxu0 0.0
        %483 = vmatprep.subr.mxu0 0.0
        %484 = vmatpush1.msra.mxu0 0.0
        %485 = vmatprep.subr.mxu0 0.0
        %486 = vmatpush1.msra.mxu0 0.0
        %487 = vmatprep.subr.mxu0 0.0
        %488 = vmatpush1.msra.mxu0 0.0
        %489 = vmatprep.subr.mxu0 0.0
        %490 = vmatpush1.msra.mxu0 0.0
        %491 = vmatprep.mubr.f32.mxu0 %v423
        %492 = vmatmul.mubr.f32.gmra.mrb[0].mxu0 %v285
        %v493 = vpop.f32.mrb[0].mxu0
        %v494 = vadd.f32 %v415, %v493
        %v495 = vpop.f32.mrb[0].mxu0
        %496 = vmatprep.mubr.f32.mxu0 %v425
        %497 = vmatmul.mubr.f32.gmra.mrb[0].mxu0 %v277
        %v498 = vpop.f32.mrb[0].mxu0
        %v499 = vadd.f32 %v420, %v498
        %v500 = vpop.f32.mrb[0].mxu0
        %501 = vdwg.mxu0
        %s502 = scalar_lea.vmem [#allocation2], 288
        %v503 = vld [vmem:[%s502] sm:$0xff]
        %v504 = vld [vmem:[%s502 + $0x8] sm:$0xff]
        %v505 = vld [vmem:[%s502 + $0x10] sm:$0xff]
        %v506 = vld [vmem:[%s502 + $0x18] sm:$0xff]
        %v507 = vld [vmem:[%s502 + $0x20] sm:$0xff]
        %v508 = vld [vmem:[%s502 + $0x28] sm:$0xff]
        %v509 = vld [vmem:[%s502 + $0x30] sm:$0xff]
        %v510 = vld [vmem:[%s502 + $0x38] sm:$0xff]
        %v511 = vld [vmem:[%s502 + $0x40] sm:$0xff]
        %v512 = vld [vmem:[%s502 + $0x48] sm:$0xff]
        %v513 = vld [vmem:[%s502 + $0x50] sm:$0xff]
        %v514 = vld [vmem:[%s502 + $0x58] sm:$0xff]
        %v515 = vld [vmem:[%s502 + $0x60] sm:$0xff]
        %v516 = vld [vmem:[%s502 + $0x68] sm:$0xff]
        %v517 = vld [vmem:[%s502 + $0x70] sm:$0xff]
        %v518 = vld [vmem:[%s502 + $0x78] sm:$0xff]
        %v519 = vld [vmem:[%s502 + $0x80] sm:$0xff]
        %v520 = vld [vmem:[%s502 + $0x88] sm:$0xff]
        %vm521 = vcmask 1045504
        %v522 = vrot.slane %v285, 2
        %v523 = vrot.slane %v277, 2
        %v524 = vsel %vm521, %v522, %v523
        %v525 = vrot.slane %v286, 2
        %v526 = vrot.slane %v279, 2
        %v527 = vsel %vm521, %v525, %v526
        %v528 = vrot.slane %v287, 2
        %v529 = vsel %vm521, %v523, %v528
        %v530 = vrot.slane %v288, 2
        %v531 = vsel %vm521, %v526, %v530
        %v534 = vsel %vm343, %v527, 0
        %v536 = vsel %vm343, %v531, 0
        %538 = vmatprep.subr.mxu0 0.0
        %539 = vmatpush1.msra.mxu0 %v503
        %540 = vmatprep.subr.mxu0 0.0
        %541 = vmatpush1.msra.mxu0 %v504
        %542 = vmatprep.subr.mxu0 0.0
        %543 = vmatpush1.msra.mxu0 %v505
        %544 = vmatprep.subr.mxu0 0.0
        %545 = vmatpush1.msra.mxu0 %v506
        %546 = vmatprep.subr.mxu0 0.0
        %547 = vmatpush1.msra.mxu0 %v507
        %548 = vmatprep.subr.mxu0 0.0
        %549 = vmatpush1.msra.mxu0 %v508
        %550 = vmatprep.subr.mxu0 0.0
        %551 = vmatpush1.msra.mxu0 %v509
        %552 = vmatprep.subr.mxu0 0.0
        %553 = vmatpush1.msra.mxu0 %v510
        %554 = vmatprep.subr.mxu0 0.0
        %555 = vmatpush1.msra.mxu0 %v511
        %556 = vmatprep.subr.mxu0 0.0
        %557 = vmatpush1.msra.mxu0 %v512
        %558 = vmatprep.subr.mxu0 0.0
        %559 = vmatpush1.msra.mxu0 %v513
        %560 = vmatprep.subr.mxu0 0.0
        %561 = vmatpush1.msra.mxu0 %v514
        %562 = vmatprep.subr.mxu0 0.0
        %563 = vmatpush1.msra.mxu0 %v515
        %564 = vmatprep.subr.mxu0 0.0
        %565 = vmatpush1.msra.mxu0 %v516
        %566 = vmatprep.subr.mxu0 0.0
        %567 = vmatpush1.msra.mxu0 %v517
        %568 = vmatprep.subr.mxu0 0.0
        %569 = vmatpush1.msra.mxu0 %v518
        %570 = vmatprep.subr.mxu0 0.0
        %571 = vmatpush1.msra.mxu0 %v519
        %572 = vmatprep.subr.mxu0 0.0
        %573 = vmatpush1.msra.mxu0 %v520
        %574 = vmatprep.subr.mxu0 0.0
        %575 = vmatpush1.msra.mxu0 0.0
        %576 = vmatprep.subr.mxu0 0.0
        %577 = vmatpush1.msra.mxu0 0.0
        %578 = vmatprep.subr.mxu0 0.0
        %579 = vmatpush1.msra.mxu0 0.0
        %580 = vmatprep.subr.mxu0 0.0
        %581 = vmatpush1.msra.mxu0 0.0
        %582 = vmatprep.subr.mxu0 0.0
        %583 = vmatpush1.msra.mxu0 0.0
        %584 = vmatprep.subr.mxu0 0.0
        %585 = vmatpush1.msra.mxu0 0.0
        %586 = vmatprep.subr.mxu0 0.0
        %587 = vmatpush1.msra.mxu0 0.0
        %588 = vmatprep.subr.mxu0 0.0
        %589 = vmatpush1.msra.mxu0 0.0
        %590 = vmatprep.subr.mxu0 0.0
        %591 = vmatpush1.msra.mxu0 0.0
        %592 = vmatprep.subr.mxu0 0.0
        %593 = vmatpush1.msra.mxu0 0.0
        %594 = vmatprep.subr.mxu0 0.0
        %595 = vmatpush1.msra.mxu0 0.0
        %596 = vmatprep.subr.mxu0 0.0
        %597 = vmatpush1.msra.mxu0 0.0
        %598 = vmatprep.subr.mxu0 0.0
        %599 = vmatpush1.msra.mxu0 0.0
        %600 = vmatprep.subr.mxu0 0.0
        %601 = vmatpush1.msra.mxu0 0.0
        %602 = vmatprep.mubr.f32.mxu0 %v534
        %603 = vmatmul.mubr.f32.gmra.mrb[0].mxu0 %v524
        %v604 = vpop.f32.mrb[0].mxu0
        %v605 = vadd.f32 0.0, %v604
        %v606 = vpop.f32.mrb[0].mxu0
        %607 = vmatprep.mubr.f32.mxu0 %v536
        %608 = vmatmul.mubr.f32.gmra.mrb[0].mxu0 %v529
        %v609 = vpop.f32.mrb[0].mxu0
        %v610 = vadd.f32 0.0, %v609
        %v611 = vpop.f32.mrb[0].mxu0
        %612 = vdwg.mxu0
        %v613 = vadd.f32 %v494, %v605
        %v614 = vadd.f32 %v499, %v610
        %v615 = vld [vmem:[%s2] sm:$0x1]
        %v617 = vlaneseq
        %v618 = vshrl.u32 %v617, 7
        %v619 = vsub.s32 0, %v618
        %v620 = vrot.slane %v615, %v619
        %v622 = vmul.f32 %v613, %v620
        %v623 = vmul.f32 %v614, %v620
        %v624 = vld [vmem:[%s3] sm:$0x1]
        %v626 = vlaneseq
        %v627 = vshrl.u32 %v626, 7
        %v628 = vsub.s32 0, %v627
        %v629 = vrot.slane %v624, %v628
        %v631 = vadd.f32 %v622, %v629
        %v632 = vadd.f32 %v623, %v629
        %vm633 = vcmp.gt.f32.partialorder %v631, 0.0
        %vm634 = vcmp.gt.f32.partialorder %v632, 0.0
        %s635 = sld [smem:[#allocation5]]
        %v636 = vstv %s635
        %v637 = vmul.f32 %v636, %v631
        %v638 = vmul.f32 %v636, %v632
        %v639 = vsel %vm633, %v631, %v637
        %v640 = vsel %vm634, %v632, %v638
        %643 = vrot.lane.b32.xlu0 %v639, 8
        %v644 = vpop.permute.xlu0 %643
        %645 = vrot.lane.b32.xlu0 %v640, 8
        %v646 = vpop.permute.xlu0 %645
        %v649 = vsel %vm264, 0.0, %v644
        %v650 = vsel %vm264, 0.0, %v646
        %v651 = vsel %vm264, %v644, 0.0
        %v652 = vsel %vm264, %v646, 0.0
        %v657 = vrot.slane %v649, 7
        %v658 = vrot.slane %v651, 7
        %v659 = vrot.slane %v650, 7
        %v660 = vsel %vm273, %v657, %v659
        %v661 = vrot.slane %v652, 7
        %v662 = vsel %vm273, %v658, %v661
        %v668 = vsel %vm273, 0.0, %v657
        %v669 = vsel %vm273, 0.0, %v658
        %v670 = vsel %vm273, %v659, 0.0
        %v671 = vsel %vm273, %v661, 0.0
        %s672 = scalar_lea.vmem [#allocation2], 432
        %v673 = vld [vmem:[%s672] sm:$0xff]
        %v674 = vld [vmem:[%s672 + $0x8] sm:$0xff]
        %v675 = vld [vmem:[%s672 + $0x10] sm:$0xff]
        %v676 = vld [vmem:[%s672 + $0x18] sm:$0xff]
        %v677 = vld [vmem:[%s672 + $0x20] sm:$0xff]
        %v678 = vld [vmem:[%s672 + $0x28] sm:$0xff]
        %v679 = vld [vmem:[%s672 + $0x30] sm:$0xff]
        %v680 = vld [vmem:[%s672 + $0x38] sm:$0xff]
        %v681 = vld [vmem:[%s672 + $0x40] sm:$0xff]
        %v682 = vld [vmem:[%s672 + $0x48] sm:$0xff]
        %v683 = vld [vmem:[%s672 + $0x50] sm:$0xff]
        %v684 = vld [vmem:[%s672 + $0x58] sm:$0xff]
        %v685 = vld [vmem:[%s672 + $0x60] sm:$0xff]
        %v686 = vld [vmem:[%s672 + $0x68] sm:$0xff]
        %v687 = vld [vmem:[%s672 + $0x70] sm:$0xff]
        %v688 = vld [vmem:[%s672 + $0x78] sm:$0xff]
        %v689 = vld [vmem:[%s672 + $0x80] sm:$0xff]
        %v690 = vld [vmem:[%s672 + $0x88] sm:$0xff]
        %s691 = scalar_lea.vmem [#allocation2], 576
        %v692 = vld [vmem:[%s691] sm:$0xff]
        %v693 = vld [vmem:[%s691 + $0x8] sm:$0xff]
        %v694 = vld [vmem:[%s691 + $0x10] sm:$0xff]
        %v695 = vld [vmem:[%s691 + $0x18] sm:$0xff]
        %v696 = vld [vmem:[%s691 + $0x20] sm:$0xff]
        %v697 = vld [vmem:[%s691 + $0x28] sm:$0xff]
        %v698 = vld [vmem:[%s691 + $0x30] sm:$0xff]
        %v699 = vld [vmem:[%s691 + $0x38] sm:$0xff]
        %v700 = vld [vmem:[%s691 + $0x40] sm:$0xff]
        %v701 = vld [vmem:[%s691 + $0x48] sm:$0xff]
        %v702 = vld [vmem:[%s691 + $0x50] sm:$0xff]
        %v703 = vld [vmem:[%s691 + $0x58] sm:$0xff]
        %v704 = vld [vmem:[%s691 + $0x60] sm:$0xff]
        %v705 = vld [vmem:[%s691 + $0x68] sm:$0xff]
        %v706 = vld [vmem:[%s691 + $0x70] sm:$0xff]
        %v707 = vld [vmem:[%s691 + $0x78] sm:$0xff]
        %v708 = vld [vmem:[%s691 + $0x80] sm:$0xff]
        %v709 = vld [vmem:[%s691 + $0x88] sm:$0xff]
        %v714 = vrot.slane %v668, 1
        %v715 = vrot.slane %v660, 1
        %v716 = vsel %vm330, %v714, %v715
        %v717 = vrot.slane %v669, 1
        %v718 = vrot.slane %v662, 1
        %v719 = vsel %vm330, %v717, %v718
        %v720 = vrot.slane %v670, 1
        %v721 = vsel %vm330, %v715, %v720
        %v722 = vrot.slane %v671, 1
        %v723 = vsel %vm330, %v718, %v722
        %v726 = vsel %vm343, %v719, 0
        %v728 = vsel %vm343, %v723, 0
        %730 = vmatprep.subr.mxu0 0.0
        %731 = vmatpush1.msra.mxu0 %v692
        %732 = vmatprep.subr.mxu0 0.0
        %733 = vmatpush1.msra.mxu0 %v693
        %734 = vmatprep.subr.mxu0 0.0
        %735 = vmatpush1.msra.mxu0 %v694
        %736 = vmatprep.subr.mxu0 0.0
        %737 = vmatpush1.msra.mxu0 %v695
        %738 = vmatprep.subr.mxu0 0.0
        %739 = vmatpush1.msra.mxu0 %v696
        %740 = vmatprep.subr.mxu0 0.0
        %741 = vmatpush1.msra.mxu0 %v697
        %742 = vmatprep.subr.mxu0 0.0
        %743 = vmatpush1.msra.mxu0 %v698
        %744 = vmatprep.subr.mxu0 0.0
        %745 = vmatpush1.msra.mxu0 %v699
        %746 = vmatprep.subr.mxu0 0.0
        %747 = vmatpush1.msra.mxu0 %v700
        %748 = vmatprep.subr.mxu0 0.0
        %749 = vmatpush1.msra.mxu0 %v701
        %750 = vmatprep.subr.mxu0 0.0
        %751 = vmatpush1.msra.mxu0 %v702
        %752 = vmatprep.subr.mxu0 0.0
        %753 = vmatpush1.msra.mxu0 %v703
        %754 = vmatprep.subr.mxu0 0.0
        %755 = vmatpush1.msra.mxu0 %v704
        %756 = vmatprep.subr.mxu0 0.0
        %757 = vmatpush1.msra.mxu0 %v705
        %758 = vmatprep.subr.mxu0 0.0
        %759 = vmatpush1.msra.mxu0 %v706
        %760 = vmatprep.subr.mxu0 0.0
        %761 = vmatpush1.msra.mxu0 %v707
        %762 = vmatprep.subr.mxu0 0.0
        %763 = vmatpush1.msra.mxu0 %v708
        %764 = vmatprep.subr.mxu0 0.0
        %765 = vmatpush1.msra.mxu0 %v709
        %766 = vmatprep.subr.mxu0 0.0
        %767 = vmatpush1.msra.mxu0 0.0
        %768 = vmatprep.subr.mxu0 0.0
        %769 = vmatpush1.msra.mxu0 0.0
        %770 = vmatprep.subr.mxu0 0.0
        %771 = vmatpush1.msra.mxu0 0.0
        %772 = vmatprep.subr.mxu0 0.0
        %773 = vmatpush1.msra.mxu0 0.0
        %774 = vmatprep.subr.mxu0 0.0
        %775 = vmatpush1.msra.mxu0 0.0
        %776 = vmatprep.subr.mxu0 0.0
        %777 = vmatpush1.msra.mxu0 0.0
        %778 = vmatprep.subr.mxu0 0.0
        %779 = vmatpush1.msra.mxu0 0.0
        %780 = vmatprep.subr.mxu0 0.0
        %781 = vmatpush1.msra.mxu0 0.0
        %782 = vmatprep.subr.mxu0 0.0
        %783 = vmatpush1.msra.mxu0 0.0
        %784 = vmatprep.subr.mxu0 0.0
        %785 = vmatpush1.msra.mxu0 0.0
        %786 = vmatprep.subr.mxu0 0.0
        %787 = vmatpush1.msra.mxu0 0.0
        %788 = vmatprep.subr.mxu0 0.0
        %789 = vmatpush1.msra.mxu0 0.0
        %790 = vmatprep.subr.mxu0 0.0
        %791 = vmatpush1.msra.mxu0 0.0
        %792 = vmatprep.subr.mxu0 0.0
        %793 = vmatpush1.msra.mxu0 0.0
        %794 = vmatprep.mubr.f32.mxu0 %v726
        %795 = vmatmul.mubr.f32.gmra.mrb[0].mxu0 %v716
        %v796 = vpop.f32.mrb[0].mxu0
        %v797 = vadd.f32 0.0, %v796
        %v798 = vpop.f32.mrb[0].mxu0
        %799 = vmatprep.mubr.f32.mxu0 %v728
        %800 = vmatmul.mubr.f32.gmra.mrb[0].mxu0 %v721
        %v801 = vpop.f32.mrb[0].mxu0
        %v802 = vadd.f32 0.0, %v801
        %v803 = vpop.f32.mrb[0].mxu0
        %804 = vdwg.mxu0
        %v805 = vsel %vm343, %v669, 0
        %v807 = vsel %vm343, %v662, 0
        %809 = vmatprep.subr.mxu0 0.0
        %810 = vmatpush1.msra.mxu0 %v673
        %811 = vmatprep.subr.mxu0 0.0
        %812 = vmatpush1.msra.mxu0 %v674
        %813 = vmatprep.subr.mxu0 0.0
        %814 = vmatpush1.msra.mxu0 %v675
        %815 = vmatprep.subr.mxu0 0.0
        %816 = vmatpush1.msra.mxu0 %v676
        %817 = vmatprep.subr.mxu0 0.0
        %818 = vmatpush1.msra.mxu0 %v677
        %819 = vmatprep.subr.mxu0 0.0
        %820 = vmatpush1.msra.mxu0 %v678
        %821 = vmatprep.subr.mxu0 0.0
        %822 = vmatpush1.msra.mxu0 %v679
        %823 = vmatprep.subr.mxu0 0.0
        %824 = vmatpush1.msra.mxu0 %v680
        %825 = vmatprep.subr.mxu0 0.0
        %826 = vmatpush1.msra.mxu0 %v681
        %827 = vmatprep.subr.mxu0 0.0
        %828 = vmatpush1.msra.mxu0 %v682
        %829 = vmatprep.subr.mxu0 0.0
        %830 = vmatpush1.msra.mxu0 %v683
        %831 = vmatprep.subr.mxu0 0.0
        %832 = vmatpush1.msra.mxu0 %v684
        %833 = vmatprep.subr.mxu0 0.0
        %834 = vmatpush1.msra.mxu0 %v685
        %835 = vmatprep.subr.mxu0 0.0
        %836 = vmatpush1.msra.mxu0 %v686
        %837 = vmatprep.subr.mxu0 0.0
        %838 = vmatpush1.msra.mxu0 %v687
        %839 = vmatprep.subr.mxu0 0.0
        %840 = vmatpush1.msra.mxu0 %v688
        %841 = vmatprep.subr.mxu0 0.0
        %842 = vmatpush1.msra.mxu0 %v689
        %843 = vmatprep.subr.mxu0 0.0
        %844 = vmatpush1.msra.mxu0 %v690
        %845 = vmatprep.subr.mxu0 0.0
        %846 = vmatpush1.msra.mxu0 0.0
        %847 = vmatprep.subr.mxu0 0.0
        %848 = vmatpush1.msra.mxu0 0.0
        %849 = vmatprep.subr.mxu0 0.0
        %850 = vmatpush1.msra.mxu0 0.0
        %851 = vmatprep.subr.mxu0 0.0
        %852 = vmatpush1.msra.mxu0 0.0
        %853 = vmatprep.subr.mxu0 0.0
        %854 = vmatpush1.msra.mxu0 0.0
        %855 = vmatprep.subr.mxu0 0.0
        %856 = vmatpush1.msra.mxu0 0.0
        %857 = vmatprep.subr.mxu0 0.0
        %858 = vmatpush1.msra.mxu0 0.0
        %859 = vmatprep.subr.mxu0 0.0
        %860 = vmatpush1.msra.mxu0 0.0
        %861 = vmatprep.subr.mxu0 0.0
        %862 = vmatpush1.msra.mxu0 0.0
        %863 = vmatprep.subr.mxu0 0.0
        %864 = vmatpush1.msra.mxu0 0.0
        %865 = vmatprep.subr.mxu0 0.0
        %866 = vmatpush1.msra.mxu0 0.0
        %867 = vmatprep.subr.mxu0 0.0
        %868 = vmatpush1.msra.mxu0 0.0
        %869 = vmatprep.subr.mxu0 0.0
        %870 = vmatpush1.msra.mxu0 0.0
        %871 = vmatprep.subr.mxu0 0.0
        %872 = vmatpush1.msra.mxu0 0.0
        %873 = vmatprep.mubr.f32.mxu0 %v805
        %874 = vmatmul.mubr.f32.gmra.mrb[0].mxu0 %v668
        %v875 = vpop.f32.mrb[0].mxu0
        %v876 = vadd.f32 %v797, %v875
        %v877 = vpop.f32.mrb[0].mxu0
        %878 = vmatprep.mubr.f32.mxu0 %v807
        %879 = vmatmul.mubr.f32.gmra.mrb[0].mxu0 %v660
        %v880 = vpop.f32.mrb[0].mxu0
        %v881 = vadd.f32 %v802, %v880
        %v882 = vpop.f32.mrb[0].mxu0
        %883 = vdwg.mxu0
        %s884 = scalar_lea.vmem [#allocation2], 720
        %v885 = vld [vmem:[%s884] sm:$0xff]
        %v886 = vld [vmem:[%s884 + $0x8] sm:$0xff]
        %v887 = vld [vmem:[%s884 + $0x10] sm:$0xff]
        %v888 = vld [vmem:[%s884 + $0x18] sm:$0xff]
        %v889 = vld [vmem:[%s884 + $0x20] sm:$0xff]
        %v890 = vld [vmem:[%s884 + $0x28] sm:$0xff]
        %v891 = vld [vmem:[%s884 + $0x30] sm:$0xff]
        %v892 = vld [vmem:[%s884 + $0x38] sm:$0xff]
        %v893 = vld [vmem:[%s884 + $0x40] sm:$0xff]
        %v894 = vld [vmem:[%s884 + $0x48] sm:$0xff]
        %v895 = vld [vmem:[%s884 + $0x50] sm:$0xff]
        %v896 = vld [vmem:[%s884 + $0x58] sm:$0xff]
        %v897 = vld [vmem:[%s884 + $0x60] sm:$0xff]
        %v898 = vld [vmem:[%s884 + $0x68] sm:$0xff]
        %v899 = vld [vmem:[%s884 + $0x70] sm:$0xff]
        %v900 = vld [vmem:[%s884 + $0x78] sm:$0xff]
        %v901 = vld [vmem:[%s884 + $0x80] sm:$0xff]
        %v902 = vld [vmem:[%s884 + $0x88] sm:$0xff]
        %v903 = vrot.slane %v668, 2
        %v904 = vrot.slane %v660, 2
        %v905 = vsel %vm521, %v903, %v904
        %v906 = vrot.slane %v669, 2
        %v907 = vrot.slane %v662, 2
        %v908 = vsel %vm521, %v906, %v907
        %v909 = vrot.slane %v670, 2
        %v910 = vsel %vm521, %v904, %v909
        %v911 = vrot.slane %v671, 2
        %v912 = vsel %vm521, %v907, %v911
        %v915 = vsel %vm343, %v908, 0
        %v917 = vsel %vm343, %v912, 0
        %919 = vmatprep.subr.mxu0 0.0
        %920 = vmatpush1.msra.mxu0 %v885
        %921 = vmatprep.subr.mxu0 0.0
        %922 = vmatpush1.msra.mxu0 %v886
        %923 = vmatprep.subr.mxu0 0.0
        %924 = vmatpush1.msra.mxu0 %v887
        %925 = vmatprep.subr.mxu0 0.0
        %926 = vmatpush1.msra.mxu0 %v888
        %927 = vmatprep.subr.mxu0 0.0
        %928 = vmatpush1.msra.mxu0 %v889
        %929 = vmatprep.subr.mxu0 0.0
        %930 = vmatpush1.msra.mxu0 %v890
        %931 = vmatprep.subr.mxu0 0.0
        %932 = vmatpush1.msra.mxu0 %v891
        %933 = vmatprep.subr.mxu0 0.0
        %934 = vmatpush1.msra.mxu0 %v892
        %935 = vmatprep.subr.mxu0 0.0
        %936 = vmatpush1.msra.mxu0 %v893
        %937 = vmatprep.subr.mxu0 0.0
        %938 = vmatpush1.msra.mxu0 %v894
        %939 = vmatprep.subr.mxu0 0.0
        %940 = vmatpush1.msra.mxu0 %v895
        %941 = vmatprep.subr.mxu0 0.0
        %942 = vmatpush1.msra.mxu0 %v896
        %943 = vmatprep.subr.mxu0 0.0
        %944 = vmatpush1.msra.mxu0 %v897
        %945 = vmatprep.subr.mxu0 0.0
        %946 = vmatpush1.msra.mxu0 %v898
        %947 = vmatprep.subr.mxu0 0.0
        %948 = vmatpush1.msra.mxu0 %v899
        %949 = vmatprep.subr.mxu0 0.0
        %950 = vmatpush1.msra.mxu0 %v900
        %951 = vmatprep.subr.mxu0 0.0
        %952 = vmatpush1.msra.mxu0 %v901
        %953 = vmatprep.subr.mxu0 0.0
        %954 = vmatpush1.msra.mxu0 %v902
        %955 = vmatprep.subr.mxu0 0.0
        %956 = vmatpush1.msra.mxu0 0.0
        %957 = vmatprep.subr.mxu0 0.0
        %958 = vmatpush1.msra.mxu0 0.0
        %959 = vmatprep.subr.mxu0 0.0
        %960 = vmatpush1.msra.mxu0 0.0
        %961 = vmatprep.subr.mxu0 0.0
        %962 = vmatpush1.msra.mxu0 0.0
        %963 = vmatprep.subr.mxu0 0.0
        %964 = vmatpush1.msra.mxu0 0.0
        %965 = vmatprep.subr.mxu0 0.0
        %966 = vmatpush1.msra.mxu0 0.0
        %967 = vmatprep.subr.mxu0 0.0
        %968 = vmatpush1.msra.mxu0 0.0
        %969 = vmatprep.subr.mxu0 0.0
        %970 = vmatpush1.msra.mxu0 0.0
        %971 = vmatprep.subr.mxu0 0.0
        %972 = vmatpush1.msra.mxu0 0.0
        %973 = vmatprep.subr.mxu0 0.0
        %974 = vmatpush1.msra.mxu0 0.0
        %975 = vmatprep.subr.mxu0 0.0
        %976 = vmatpush1.msra.mxu0 0.0
        %977 = vmatprep.subr.mxu0 0.0
        %978 = vmatpush1.msra.mxu0 0.0
        %979 = vmatprep.subr.mxu0 0.0
        %980 = vmatpush1.msra.mxu0 0.0
        %981 = vmatprep.subr.mxu0 0.0
        %982 = vmatpush1.msra.mxu0 0.0
        %983 = vmatprep.mubr.f32.mxu0 %v915
        %984 = vmatmul.mubr.f32.gmra.mrb[0].mxu0 %v905
        %v985 = vpop.f32.mrb[0].mxu0
        %v986 = vadd.f32 0.0, %v985
        %v987 = vpop.f32.mrb[0].mxu0
        %988 = vmatprep.mubr.f32.mxu0 %v917
        %989 = vmatmul.mubr.f32.gmra.mrb[0].mxu0 %v910
        %v990 = vpop.f32.mrb[0].mxu0
        %v991 = vadd.f32 0.0, %v990
        %v992 = vpop.f32.mrb[0].mxu0
        %993 = vdwg.mxu0
        %v994 = vadd.f32 %v876, %v986
        %v995 = vadd.f32 %v881, %v991
        %s996 = scalar_lea.vmem %s2, 1
        %v997 = vld [vmem:[%s996] sm:$0x1]
        %v999 = vlaneseq
        %v1000 = vshrl.u32 %v999, 7
        %v1001 = vsub.s32 0, %v1000
        %v1002 = vrot.slane %v997, %v1001
        %v1004 = vmul.f32 %v994, %v1002
        %v1005 = vmul.f32 %v995, %v1002
        %s1006 = scalar_lea.vmem %s3, 1
        %v1007 = vld [vmem:[%s1006] sm:$0x1]
        %v1009 = vlaneseq
        %v1010 = vshrl.u32 %v1009, 7
        %v1011 = vsub.s32 0, %v1010
        %v1012 = vrot.slane %v1007, %v1011
        %v1014 = vadd.f32 %v1004, %v1012
        %v1015 = vadd.f32 %v1005, %v1012
        %vm1016 = vcmp.gt.f32.partialorder %v1014, 0.0
        %vm1017 = vcmp.gt.f32.partialorder %v1015, 0.0
        %s1018 = sld [smem:[#allocation5 + $0x1]]
        %v1019 = vstv %s1018
        %v1020 = vmul.f32 %v1019, %v1014
        %v1021 = vmul.f32 %v1019, %v1015
        %v1022 = vsel %vm1016, %v1014, %v1020
        %v1023 = vsel %vm1017, %v1015, %v1021
        %1026 = vrot.lane.b32.xlu0 %v1022, 8
        %v1027 = vpop.permute.xlu0 %1026
        %1028 = vrot.lane.b32.xlu0 %v1023, 8
        %v1029 = vpop.permute.xlu0 %1028
        %v1032 = vsel %vm264, 0.0, %v1027
        %v1033 = vsel %vm264, 0.0, %v1029
        %v1034 = vsel %vm264, %v1027, 0.0
        %v1035 = vsel %vm264, %v1029, 0.0
        %v1040 = vrot.slane %v1032, 7
        %v1041 = vrot.slane %v1034, 7
        %v1042 = vrot.slane %v1033, 7
        %v1043 = vsel %vm273, %v1040, %v1042
        %v1044 = vrot.slane %v1035, 7
        %v1045 = vsel %vm273, %v1041, %v1044
        %v1051 = vsel %vm273, 0.0, %v1040
        %v1052 = vsel %vm273, 0.0, %v1041
        %v1053 = vsel %vm273, %v1042, 0.0
        %v1054 = vsel %vm273, %v1044, 0.0
        %s1055 = scalar_lea.vmem [#allocation2], 864
        %v1056 = vld [vmem:[%s1055] sm:$0xff]
        %v1057 = vld [vmem:[%s1055 + $0x8] sm:$0xff]
        %v1058 = vld [vmem:[%s1055 + $0x10] sm:$0xff]
        %v1059 = vld [vmem:[%s1055 + $0x18] sm:$0xff]
        %v1060 = vld [vmem:[%s1055 + $0x20] sm:$0xff]
        %v1061 = vld [vmem:[%s1055 + $0x28] sm:$0xff]
        %v1062 = vld [vmem:[%s1055 + $0x30] sm:$0xff]
        %v1063 = vld [vmem:[%s1055 + $0x38] sm:$0xff]
        %v1064 = vld [vmem:[%s1055 + $0x40] sm:$0xff]
        %v1065 = vld [vmem:[%s1055 + $0x48] sm:$0xff]
        %v1066 = vld [vmem:[%s1055 + $0x50] sm:$0xff]
        %v1067 = vld [vmem:[%s1055 + $0x58] sm:$0xff]
        %v1068 = vld [vmem:[%s1055 + $0x60] sm:$0xff]
        %v1069 = vld [vmem:[%s1055 + $0x68] sm:$0xff]
        %v1070 = vld [vmem:[%s1055 + $0x70] sm:$0xff]
        %v1071 = vld [vmem:[%s1055 + $0x78] sm:$0xff]
        %v1072 = vld [vmem:[%s1055 + $0x80] sm:$0xff]
        %v1073 = vld [vmem:[%s1055 + $0x88] sm:$0xff]
        %s1074 = scalar_lea.vmem [#allocation2], 1008
        %v1075 = vld [vmem:[%s1074] sm:$0xff]
        %v1076 = vld [vmem:[%s1074 + $0x8] sm:$0xff]
        %v1077 = vld [vmem:[%s1074 + $0x10] sm:$0xff]
        %v1078 = vld [vmem:[%s1074 + $0x18] sm:$0xff]
        %v1079 = vld [vmem:[%s1074 + $0x20] sm:$0xff]
        %v1080 = vld [vmem:[%s1074 + $0x28] sm:$0xff]
        %v1081 = vld [vmem:[%s1074 + $0x30] sm:$0xff]
        %v1082 = vld [vmem:[%s1074 + $0x38] sm:$0xff]
        %v1083 = vld [vmem:[%s1074 + $0x40] sm:$0xff]
        %v1084 = vld [vmem:[%s1074 + $0x48] sm:$0xff]
        %v1085 = vld [vmem:[%s1074 + $0x50] sm:$0xff]
        %v1086 = vld [vmem:[%s1074 + $0x58] sm:$0xff]
        %v1087 = vld [vmem:[%s1074 + $0x60] sm:$0xff]
        %v1088 = vld [vmem:[%s1074 + $0x68] sm:$0xff]
        %v1089 = vld [vmem:[%s1074 + $0x70] sm:$0xff]
        %v1090 = vld [vmem:[%s1074 + $0x78] sm:$0xff]
        %v1091 = vld [vmem:[%s1074 + $0x80] sm:$0xff]
        %v1092 = vld [vmem:[%s1074 + $0x88] sm:$0xff]
        %v1097 = vrot.slane %v1051, 1
        %v1098 = vrot.slane %v1043, 1
        %v1099 = vsel %vm330, %v1097, %v1098
        %v1100 = vrot.slane %v1052, 1
        %v1101 = vrot.slane %v1045, 1
        %v1102 = vsel %vm330, %v1100, %v1101
        %v1103 = vrot.slane %v1053, 1
        %v1104 = vsel %vm330, %v1098, %v1103
        %v1105 = vrot.slane %v1054, 1
        %v1106 = vsel %vm330, %v1101, %v1105
        %v1109 = vsel %vm343, %v1102, 0
        %v1111 = vsel %vm343, %v1106, 0
        %1113 = vmatprep.subr.mxu0 0.0
        %1114 = vmatpush1.msra.mxu0 %v1075
        %1115 = vmatprep.subr.mxu0 0.0
        %1116 = vmatpush1.msra.mxu0 %v1076
        %1117 = vmatprep.subr.mxu0 0.0
        %1118 = vmatpush1.msra.mxu0 %v1077
        %1119 = vmatprep.subr.mxu0 0.0
        %1120 = vmatpush1.msra.mxu0 %v1078
        %1121 = vmatprep.subr.mxu0 0.0
        %1122 = vmatpush1.msra.mxu0 %v1079
        %1123 = vmatprep.subr.mxu0 0.0
        %1124 = vmatpush1.msra.mxu0 %v1080
        %1125 = vmatprep.subr.mxu0 0.0
        %1126 = vmatpush1.msra.mxu0 %v1081
        %1127 = vmatprep.subr.mxu0 0.0
        %1128 = vmatpush1.msra.mxu0 %v1082
        %1129 = vmatprep.subr.mxu0 0.0
        %1130 = vmatpush1.msra.mxu0 %v1083
        %1131 = vmatprep.subr.mxu0 0.0
        %1132 = vmatpush1.msra.mxu0 %v1084
        %1133 = vmatprep.subr.mxu0 0.0
        %1134 = vmatpush1.msra.mxu0 %v1085
        %1135 = vmatprep.subr.mxu0 0.0
        %1136 = vmatpush1.msra.mxu0 %v1086
        %1137 = vmatprep.subr.mxu0 0.0
        %1138 = vmatpush1.msra.mxu0 %v1087
        %1139 = vmatprep.subr.mxu0 0.0
        %1140 = vmatpush1.msra.mxu0 %v1088
        %1141 = vmatprep.subr.mxu0 0.0
        %1142 = vmatpush1.msra.mxu0 %v1089
        %1143 = vmatprep.subr.mxu0 0.0
        %1144 = vmatpush1.msra.mxu0 %v1090
        %1145 = vmatprep.subr.mxu0 0.0
        %1146 = vmatpush1.msra.mxu0 %v1091
        %1147 = vmatprep.subr.mxu0 0.0
        %1148 = vmatpush1.msra.mxu0 %v1092
        %1149 = vmatprep.subr.mxu0 0.0
        %1150 = vmatpush1.msra.mxu0 0.0
        %1151 = vmatprep.subr.mxu0 0.0
        %1152 = vmatpush1.msra.mxu0 0.0
        %1153 = vmatprep.subr.mxu0 0.0
        %1154 = vmatpush1.msra.mxu0 0.0
        %1155 = vmatprep.subr.mxu0 0.0
        %1156 = vmatpush1.msra.mxu0 0.0
        %1157 = vmatprep.subr.mxu0 0.0
        %1158 = vmatpush1.msra.mxu0 0.0
        %1159 = vmatprep.subr.mxu0 0.0
        %1160 = vmatpush1.msra.mxu0 0.0
        %1161 = vmatprep.subr.mxu0 0.0
        %1162 = vmatpush1.msra.mxu0 0.0
        %1163 = vmatprep.subr.mxu0 0.0
        %1164 = vmatpush1.msra.mxu0 0.0
        %1165 = vmatprep.subr.mxu0 0.0
        %1166 = vmatpush1.msra.mxu0 0.0
        %1167 = vmatprep.subr.mxu0 0.0
        %1168 = vmatpush1.msra.mxu0 0.0
        %1169 = vmatprep.subr.mxu0 0.0
        %1170 = vmatpush1.msra.mxu0 0.0
        %1171 = vmatprep.subr.mxu0 0.0
        %1172 = vmatpush1.msra.mxu0 0.0
        %1173 = vmatprep.subr.mxu0 0.0
        %1174 = vmatpush1.msra.mxu0 0.0
        %1175 = vmatprep.subr.mxu0 0.0
        %1176 = vmatpush1.msra.mxu0 0.0
        %1177 = vmatprep.mubr.f32.mxu0 %v1109
        %1178 = vmatmul.mubr.f32.gmra.mrb[0].mxu0 %v1099
        %v1179 = vpop.f32.mrb[0].mxu0
        %v1180 = vadd.f32 0.0, %v1179
        %v1181 = vpop.f32.mrb[0].mxu0
        %1182 = vmatprep.mubr.f32.mxu0 %v1111
        %1183 = vmatmul.mubr.f32.gmra.mrb[0].mxu0 %v1104
        %v1184 = vpop.f32.mrb[0].mxu0
        %v1185 = vadd.f32 0.0, %v1184
        %v1186 = vpop.f32.mrb[0].mxu0
        %1187 = vdwg.mxu0
        %v1188 = vsel %vm343, %v1052, 0
        %v1190 = vsel %vm343, %v1045, 0
        %1192 = vmatprep.subr.mxu0 0.0
        %1193 = vmatpush1.msra.mxu0 %v1056
        %1194 = vmatprep.subr.mxu0 0.0
        %1195 = vmatpush1.msra.mxu0 %v1057
        %1196 = vmatprep.subr.mxu0 0.0
        %1197 = vmatpush1.msra.mxu0 %v1058
        %1198 = vmatprep.subr.mxu0 0.0
        %1199 = vmatpush1.msra.mxu0 %v1059
        %1200 = vmatprep.subr.mxu0 0.0
        %1201 = vmatpush1.msra.mxu0 %v1060
        %1202 = vmatprep.subr.mxu0 0.0
        %1203 = vmatpush1.msra.mxu0 %v1061
        %1204 = vmatprep.subr.mxu0 0.0
        %1205 = vmatpush1.msra.mxu0 %v1062
        %1206 = vmatprep.subr.mxu0 0.0
        %1207 = vmatpush1.msra.mxu0 %v1063
        %1208 = vmatprep.subr.mxu0 0.0
        %1209 = vmatpush1.msra.mxu0 %v1064
        %1210 = vmatprep.subr.mxu0 0.0
        %1211 = vmatpush1.msra.mxu0 %v1065
        %1212 = vmatprep.subr.mxu0 0.0
        %1213 = vmatpush1.msra.mxu0 %v1066
        %1214 = vmatprep.subr.mxu0 0.0
        %1215 = vmatpush1.msra.mxu0 %v1067
        %1216 = vmatprep.subr.mxu0 0.0
        %1217 = vmatpush1.msra.mxu0 %v1068
        %1218 = vmatprep.subr.mxu0 0.0
        %1219 = vmatpush1.msra.mxu0 %v1069
        %1220 = vmatprep.subr.mxu0 0.0
        %1221 = vmatpush1.msra.mxu0 %v1070
        %1222 = vmatprep.subr.mxu0 0.0
        %1223 = vmatpush1.msra.mxu0 %v1071
        %1224 = vmatprep.subr.mxu0 0.0
        %1225 = vmatpush1.msra.mxu0 %v1072
        %1226 = vmatprep.subr.mxu0 0.0
        %1227 = vmatpush1.msra.mxu0 %v1073
        %1228 = vmatprep.subr.mxu0 0.0
        %1229 = vmatpush1.msra.mxu0 0.0
        %1230 = vmatprep.subr.mxu0 0.0
        %1231 = vmatpush1.msra.mxu0 0.0
        %1232 = vmatprep.subr.mxu0 0.0
        %1233 = vmatpush1.msra.mxu0 0.0
        %1234 = vmatprep.subr.mxu0 0.0
        %1235 = vmatpush1.msra.mxu0 0.0
        %1236 = vmatprep.subr.mxu0 0.0
        %1237 = vmatpush1.msra.mxu0 0.0
        %1238 = vmatprep.subr.mxu0 0.0
        %1239 = vmatpush1.msra.mxu0 0.0
        %1240 = vmatprep.subr.mxu0 0.0
        %1241 = vmatpush1.msra.mxu0 0.0
        %1242 = vmatprep.subr.mxu0 0.0
        %1243 = vmatpush1.msra.mxu0 0.0
        %1244 = vmatprep.subr.mxu0 0.0
        %1245 = vmatpush1.msra.mxu0 0.0
        %1246 = vmatprep.subr.mxu0 0.0
        %1247 = vmatpush1.msra.mxu0 0.0
        %1248 = vmatprep.subr.mxu0 0.0
        %1249 = vmatpush1.msra.mxu0 0.0
        %1250 = vmatprep.subr.mxu0 0.0
        %1251 = vmatpush1.msra.mxu0 0.0
        %1252 = vmatprep.subr.mxu0 0.0
        %1253 = vmatpush1.msra.mxu0 0.0
        %1254 = vmatprep.subr.mxu0 0.0
        %1255 = vmatpush1.msra.mxu0 0.0
        %1256 = vmatprep.mubr.f32.mxu0 %v1188
        %1257 = vmatmul.mubr.f32.gmra.mrb[0].mxu0 %v1051
        %v1258 = vpop.f32.mrb[0].mxu0
        %v1259 = vadd.f32 %v1180, %v1258
        %v1260 = vpop.f32.mrb[0].mxu0
        %1261 = vmatprep.mubr.f32.mxu0 %v1190
        %1262 = vmatmul.mubr.f32.gmra.mrb[0].mxu0 %v1043
        %v1263 = vpop.f32.mrb[0].mxu0
        %v1264 = vadd.f32 %v1185, %v1263
        %v1265 = vpop.f32.mrb[0].mxu0
        %1266 = vdwg.mxu0
        %s1267 = scalar_lea.vmem [#allocation2], 1152
        %v1268 = vld [vmem:[%s1267] sm:$0xff]
        %v1269 = vld [vmem:[%s1267 + $0x8] sm:$0xff]
        %v1270 = vld [vmem:[%s1267 + $0x10] sm:$0xff]
        %v1271 = vld [vmem:[%s1267 + $0x18] sm:$0xff]
        %v1272 = vld [vmem:[%s1267 + $0x20] sm:$0xff]
        %v1273 = vld [vmem:[%s1267 + $0x28] sm:$0xff]
        %v1274 = vld [vmem:[%s1267 + $0x30] sm:$0xff]
        %v1275 = vld [vmem:[%s1267 + $0x38] sm:$0xff]
        %v1276 = vld [vmem:[%s1267 + $0x40] sm:$0xff]
        %v1277 = vld [vmem:[%s1267 + $0x48] sm:$0xff]
        %v1278 = vld [vmem:[%s1267 + $0x50] sm:$0xff]
        %v1279 = vld [vmem:[%s1267 + $0x58] sm:$0xff]
        %v1280 = vld [vmem:[%s1267 + $0x60] sm:$0xff]
        %v1281 = vld [vmem:[%s1267 + $0x68] sm:$0xff]
        %v1282 = vld [vmem:[%s1267 + $0x70] sm:$0xff]
        %v1283 = vld [vmem:[%s1267 + $0x78] sm:$0xff]
        %v1284 = vld [vmem:[%s1267 + $0x80] sm:$0xff]
        %v1285 = vld [vmem:[%s1267 + $0x88] sm:$0xff]
        %v1286 = vrot.slane %v1051, 2
        %v1287 = vrot.slane %v1043, 2
        %v1288 = vsel %vm521, %v1286, %v1287
        %v1289 = vrot.slane %v1052, 2
        %v1290 = vrot.slane %v1045, 2
        %v1291 = vsel %vm521, %v1289, %v1290
        %v1292 = vrot.slane %v1053, 2
        %v1293 = vsel %vm521, %v1287, %v1292
        %v1294 = vrot.slane %v1054, 2
        %v1295 = vsel %vm521, %v1290, %v1294
        %v1298 = vsel %vm343, %v1291, 0
        %v1300 = vsel %vm343, %v1295, 0
        %1302 = vmatprep.subr.mxu0 0.0
        %1303 = vmatpush1.msra.mxu0 %v1268
        %1304 = vmatprep.subr.mxu0 0.0
        %1305 = vmatpush1.msra.mxu0 %v1269
        %1306 = vmatprep.subr.mxu0 0.0
        %1307 = vmatpush1.msra.mxu0 %v1270
        %1308 = vmatprep.subr.mxu0 0.0
        %1309 = vmatpush1.msra.mxu0 %v1271
        %1310 = vmatprep.subr.mxu0 0.0
        %1311 = vmatpush1.msra.mxu0 %v1272
        %1312 = vmatprep.subr.mxu0 0.0
        %1313 = vmatpush1.msra.mxu0 %v1273
        %1314 = vmatprep.subr.mxu0 0.0
        %1315 = vmatpush1.msra.mxu0 %v1274
        %1316 = vmatprep.subr.mxu0 0.0
        %1317 = vmatpush1.msra.mxu0 %v1275
        %1318 = vmatprep.subr.mxu0 0.0
        %1319 = vmatpush1.msra.mxu0 %v1276
        %1320 = vmatprep.subr.mxu0 0.0
        %1321 = vmatpush1.msra.mxu0 %v1277
        %1322 = vmatprep.subr.mxu0 0.0
        %1323 = vmatpush1.msra.mxu0 %v1278
        %1324 = vmatprep.subr.mxu0 0.0
        %1325 = vmatpush1.msra.mxu0 %v1279
        %1326 = vmatprep.subr.mxu0 0.0
        %1327 = vmatpush1.msra.mxu0 %v1280
        %1328 = vmatprep.subr.mxu0 0.0
        %1329 = vmatpush1.msra.mxu0 %v1281
        %1330 = vmatprep.subr.mxu0 0.0
        %1331 = vmatpush1.msra.mxu0 %v1282
        %1332 = vmatprep.subr.mxu0 0.0
        %1333 = vmatpush1.msra.mxu0 %v1283
        %1334 = vmatprep.subr.mxu0 0.0
        %1335 = vmatpush1.msra.mxu0 %v1284
        %1336 = vmatprep.subr.mxu0 0.0
        %1337 = vmatpush1.msra.mxu0 %v1285
        %1338 = vmatprep.subr.mxu0 0.0
        %1339 = vmatpush1.msra.mxu0 0.0
        %1340 = vmatprep.subr.mxu0 0.0
        %1341 = vmatpush1.msra.mxu0 0.0
        %1342 = vmatprep.subr.mxu0 0.0
        %1343 = vmatpush1.msra.mxu0 0.0
        %1344 = vmatprep.subr.mxu0 0.0
        %1345 = vmatpush1.msra.mxu0 0.0
        %1346 = vmatprep.subr.mxu0 0.0
        %1347 = vmatpush1.msra.mxu0 0.0
        %1348 = vmatprep.subr.mxu0 0.0
        %1349 = vmatpush1.msra.mxu0 0.0
        %1350 = vmatprep.subr.mxu0 0.0
        %1351 = vmatpush1.msra.mxu0 0.0
        %1352 = vmatprep.subr.mxu0 0.0
        %1353 = vmatpush1.msra.mxu0 0.0
        %1354 = vmatprep.subr.mxu0 0.0
        %1355 = vmatpush1.msra.mxu0 0.0
        %1356 = vmatprep.subr.mxu0 0.0
        %1357 = vmatpush1.msra.mxu0 0.0
        %1358 = vmatprep.subr.mxu0 0.0
        %1359 = vmatpush1.msra.mxu0 0.0
        %1360 = vmatprep.subr.mxu0 0.0
        %1361 = vmatpush1.msra.mxu0 0.0
        %1362 = vmatprep.subr.mxu0 0.0
        %1363 = vmatpush1.msra.mxu0 0.0
        %1364 = vmatprep.subr.mxu0 0.0
        %1365 = vmatpush1.msra.mxu0 0.0
        %1366 = vmatprep.mubr.f32.mxu0 %v1298
        %1367 = vmatmul.mubr.f32.gmra.mrb[0].mxu0 %v1288
        %v1368 = vpop.f32.mrb[0].mxu0
        %v1369 = vadd.f32 0.0, %v1368
        %v1370 = vpop.f32.mrb[0].mxu0
        %1371 = vmatprep.mubr.f32.mxu0 %v1300
        %1372 = vmatmul.mubr.f32.gmra.mrb[0].mxu0 %v1293
        %v1373 = vpop.f32.mrb[0].mxu0
        %v1374 = vadd.f32 0.0, %v1373
        %v1375 = vpop.f32.mrb[0].mxu0
        %1376 = vdwg.mxu0
        %v1377 = vadd.f32 %v1259, %v1369
        %v1378 = vadd.f32 %v1264, %v1374
        %s1379 = scalar_lea.vmem %s2, 2
        %v1380 = vld [vmem:[%s1379] sm:$0x1]
        %v1382 = vlaneseq
        %v1383 = vshrl.u32 %v1382, 7
        %v1384 = vsub.s32 0, %v1383
        %v1385 = vrot.slane %v1380, %v1384
        %v1387 = vmul.f32 %v1377, %v1385
        %v1388 = vmul.f32 %v1378, %v1385
        %s1389 = scalar_lea.vmem %s3, 2
        %v1390 = vld [vmem:[%s1389] sm:$0x1]
        %v1392 = vlaneseq
        %v1393 = vshrl.u32 %v1392, 7
        %v1394 = vsub.s32 0, %v1393
        %v1395 = vrot.slane %v1390, %v1394
        %v1397 = vadd.f32 %v1387, %v1395
        %v1398 = vadd.f32 %v1388, %v1395
        %vm1399 = vcmp.gt.f32.partialorder %v1397, 0.0
        %vm1400 = vcmp.gt.f32.partialorder %v1398, 0.0
        %s1401 = sld [smem:[#allocation5 + $0x2]]
        %v1402 = vstv %s1401
        %v1403 = vmul.f32 %v1402, %v1397
        %v1404 = vmul.f32 %v1402, %v1398
        %v1405 = vsel %vm1399, %v1397, %v1403
        %v1406 = vsel %vm1400, %v1398, %v1404
        %1407 = vst [vmem:[%s253] sm:$0xff] %v1405
        %1408 = vst [vmem:[%s253 + $0x8] sm:$0xff] %v1406
        %p1409 = scmp.lt.s32.totalorder %s18, 1
        %s1410 = scalar_select %p1409, %s18, 1
        %s1411 = smul.addr %s1410, 2
        %s1412 = smul.addr %s1411, 8
        %s1413 = scalar_lea.vmem %s5, %s1412
        // Predicated region
        $region49: #{dec_block_forward.1} parent=39 // pred_check
          %p1414 = pneg %p146
        $region50: #{dec_block_forward.1} parent=39 // pred_check_branch
          %1416 = sbr.rel (%p1414) target = $region52
        $region51: #{dec_block_forward.1} parent=39 // pred_region
          _
        $region52: #{dec_block_forward.1} parent=39 // pred_fallthru
          _
      $region40: #{dec_block_forward.1} parent=5 // pred_fallthru
        _
      %p1417 = scmp.le.s32.totalorder 2, %s13
      // Predicated region
      $region53: #{dec_block_forward.1} parent=5 // pred_check
        %p1418 = pneg %p1417
      $region54: #{dec_block_forward.1} parent=5 // pred_check_branch
        %1420 = sbr.rel (%p1418) target = $region56
      $region55: #{dec_block_forward.1} parent=5 // pred_region
        %s1421 = ssub.s32 %s13, 2
        // Predicated region
        $region57: #{dec_block_forward.1} parent=55 // pred_check
          %p1422 = pneg %p152
        $region58: #{dec_block_forward.1} parent=55 // pred_check_branch
          %1424 = sbr.rel (%p1422) target = $region60
        $region59: #{dec_block_forward.1} parent=55 // pred_region
          %p1425 = scmp.lt.s32.totalorder %s19, 1
          %s1426 = scalar_select %p1425, %s19, 1
          %s1427 = smul.addr %s1426, 2
          %s1428 = smul.addr %s1427, 8
          %s1429 = scalar_lea.vmem %s5, %s1428
        $region60: #{dec_block_forward.1} parent=55 // pred_fallthru
          _
      $region56: #{dec_block_forward.1} parent=5 // pred_fallthru
        _
    $region6: #{dec_block_forward.1} parent=1 // loop_footer
      %s17 = sadd.s32 1, %s13
    $region7: #{dec_block_forward.1} parent=1 // loop_footer_branch
      %12 = sbr.rel target = $region3
    $region8: #{dec_block_forward.1} parent=1 // loop_exit
      _
    %1430 = vsyncpa [#allocation3], 1
    %s1431 = scalar_lea.sflag [#allocation3], 1
    %1432 = vsyncpa %s1431, 1
    %1433 = vsyncpa [#allocation4], 1
    %s1434 = scalar_lea.sflag [#allocation4], 1
    %1435 = vsyncpa %s1434, 1

</llo_original>
